<compile_context>
chip_gen: v6e
topology: v6e:2x2x1
jax: 0.10.0
libtpu: 0.0.40
codegen_flags: <defaults>
</compile_context>

<pallas_src>
import jax
import jax.numpy as jnp
from jax import lax
from jax.experimental import pallas as pl
from jax.experimental.pallas import tpu as pltpu


# ------------------------------ Fused kernel ---------------------------------
def fused_kernel(ids_ref, mask_ref, emb_ref, wp_ref, bp_ref, wvfc_ref,
                 bvfc_ref, out_ref):
    Bt, S = ids_ref.shape
    Vpad = emb_ref.shape[0]

    ids = ids_ref[...]                                    # [Bt, S] int32
    mask = mask_ref[...]                                  # [Bt, S] f32

    # Mask-weighted one-hot histogram over the (zero-padded) vocabulary.
    iota_v = lax.broadcasted_iota(jnp.int32, (Bt, S, Vpad), 2)
    hist = jnp.sum(
        jnp.where(iota_v == ids[:, :, None], mask[:, :, None], 0.0),
        axis=1)                                           # [Bt, Vpad]

    # Masked embedding sum == hist @ table  (one MXU matmul, no HBM gather).
    acc = jnp.dot(hist, emb_ref[...], preferred_element_type=jnp.float32)

    # Guarded masked mean (no NaN/Inf for all-zero mask rows).
    denom = jnp.maximum(jnp.sum(mask, axis=1, keepdims=True), 1.0)  # [Bt, 1]
    mean = acc * pl.reciprocal(denom, approx=False)                 # [Bt, H]

    # Pooler dense + tanh (stand-in for BERT pooled_output).
    pooled = jnp.tanh(
        jnp.dot(mean, wp_ref[...], preferred_element_type=jnp.float32)
        + bp_ref[...])

    # Attention on a length-1 sequence: softmax over the size-1 axis is 1, so
    # attention_output == v; v-linear and fc are folded in prepare_params():
    #   logits = pooled @ (wv_t @ wfc_pad) + (bv @ wfc_pad + bfc_pad)
    out_ref[...] = (
        jnp.dot(pooled, wvfc_ref[...], preferred_element_type=jnp.float32)
        + bvfc_ref[...])


# --------------------------------- Wrapper -----------------------------------
def run_fused(input_ids, mask_f, emb_pad, wp_t, bp, wvfc, bvfc):
    B, S = input_ids.shape
    Vpad, H = emb_pad.shape
    NPAD = wvfc.shape[1]

    Bt = 8 if (B >= 8 and B % 8 == 0) else B
    assert B % Bt == 0, "batch must tile evenly"
    grid = (B // Bt,)

    return pl.pallas_call(
        fused_kernel,
        out_shape=jax.ShapeDtypeStruct((B, NPAD), jnp.float32),
        grid_spec=pltpu.PrefetchScalarGridSpec(
            num_scalar_prefetch=0,
            grid=grid,
            in_specs=[
                pl.BlockSpec((Bt, S), lambda b: (b, 0)),       # input_ids
                pl.BlockSpec((Bt, S), lambda b: (b, 0)),       # mask
                pl.BlockSpec((Vpad, H), lambda b: (0, 0)),     # emb table
                pl.BlockSpec((H, H), lambda b: (0, 0)),        # wp_t
                pl.BlockSpec((1, H), lambda b: (0, 0)),        # bp
                pl.BlockSpec((H, NPAD), lambda b: (0, 0)),     # wvfc (folded)
                pl.BlockSpec((1, NPAD), lambda b: (0, 0)),     # bvfc (folded)
            ],
            out_specs=pl.BlockSpec((Bt, NPAD), lambda b: (b, 0)),
        ),
        compiler_params=pltpu.CompilerParams(
            dimension_semantics=("parallel",),
            vmem_limit_bytes=32 * 1024 * 1024,   # safe on v5e/v6e/v7x
        ),
    )(input_ids, mask_f, emb_pad, wp_t, bp, wvfc, bvfc)


def prepare_params(params, npad=128):
    """One-time weight prep (hoisted out of the per-call forward path)."""
    V, H = params["emb"].shape
    Vpad = ((V + 127) // 128) * 128
    # Zero-padded vocab rows contribute nothing (hist is zero there).
    emb_pad = jnp.zeros((Vpad, H), jnp.float32).at[:V, :].set(params["emb"])
    # Fold the provably-dead attention head with fc, zero-padded to 128 lanes.
    wfc_pad = jnp.zeros((H, npad), jnp.float32).at[:, :2].set(params["wfc_t"])
    bfc_pad = jnp.zeros((1, npad), jnp.float32).at[:, :2].set(params["bfc"])
    wvfc = params["wv_t"] @ wfc_pad                      # [H, 128]
    bvfc = params["bv"] @ wfc_pad + bfc_pad              # [1, 128]
    return {"emb_pad": emb_pad, "wp_t": params["wp_t"], "bp": params["bp"],
            "wvfc": wvfc, "bvfc": bvfc}


def bert_binary_classifier_forward(input_ids, attention_mask, prepped):
    mask_f = attention_mask.astype(jnp.float32)
    out_pad = run_fused(input_ids.astype(jnp.int32), mask_f,
                        prepped["emb_pad"], prepped["wp_t"], prepped["bp"],
                        prepped["wvfc"], prepped["bvfc"])        # [B, 128]
    return out_pad[:, :2]


# ----------------------------- Reference (JAX) --------------------------------
def reference_forward(input_ids, attention_mask, params):
    embedded = jnp.take(params["emb"], input_ids, axis=0)
    mask_f = attention_mask.astype(jnp.float32)
    denom = jnp.maximum(jnp.sum(mask_f, axis=1, keepdims=True), 1.0)
    mean = jnp.sum(embedded * mask_f[:, :, None], axis=1) / denom
    pooled = jnp.tanh(mean @ params["wp_t"] + params["bp"])
    # Full (un-elided) Attention module semantics on pooled.unsqueeze(1):
    x = pooled[:, None, :]                                       # [B, 1, H]
    q = x @ params["wq_t"] + params["bq"]
    k = x @ params["wk_t"] + params["bk"]
    v = x @ params["wv_t"] + params["bv"]
    s = jnp.einsum("bqh,bkh->bqk", q, k)
    attn = jax.nn.softmax(s, axis=2)
    out = jnp.einsum("bqk,bkh->bqh", attn, v)[:, 0, :]
    return out @ params["wfc_t"] + params["bfc"]


if __name__ == "__main__":
    B, S, H, V = 8, 128, 128, 100

    key = jax.random.PRNGKey(0)
    keys = jax.random.split(key, 12)

    def lin(k, out_f, in_f):
        scale = 1.0 / jnp.sqrt(in_f)
        return jax.random.uniform(k, (out_f, in_f), jnp.float32, -scale, scale)

    params = {
        "emb":   jax.random.normal(keys[0], (V, H), jnp.float32) * 0.02,
        # pooler dense [H, H] (stored transposed for x @ W_t)
        "wp_t":  lin(keys[1], H, H).T,
        "bp":    jax.random.normal(keys[2], (1, H), jnp.float32) * 0.02,
        # Attention q/k/v linears (q/k only used by the reference; provably
        # dead in the forward output, elided in the kernel path)
        "wq_t":  lin(keys[3], H, H).T,
        "bq":    jax.random.normal(keys[4], (1, H), jnp.float32) * 0.02,
        "wk_t":  lin(keys[5], H, H).T,
        "bk":    jax.random.normal(keys[6], (1, H), jnp.float32) * 0.02,
        "wv_t":  lin(keys[7], H, H).T,
        "bv":    jax.random.normal(keys[8], (1, H), jnp.float32) * 0.02,
        # fc: hidden -> 2
        "wfc_t": lin(keys[9], 2, H).T,
        "bfc":   jax.random.normal(keys[10], (1, 2), jnp.float32) * 0.02,
    }

    input_ids = jax.random.randint(keys[11], (B, S), 0, V, dtype=jnp.int32)
    lengths = jnp.array([S, 100, 64, 33, 17, S, 90, 1], dtype=jnp.int32)
    attention_mask = (jnp.arange(S, dtype=jnp.int32)[None, :]
                      < lengths[:, None]).astype(jnp.int32)

    prepped = prepare_params(params)   # one-time weight folding / padding

    logits = bert_binary_classifier_forward(input_ids, attention_mask, prepped)
    jax.block_until_ready(logits)

    ref = reference_forward(input_ids, attention_mask, params)
    assert logits.shape == (B, 2)
    assert jnp.allclose(logits, ref, atol=1e-4, rtol=1e-4), (
        jnp.max(jnp.abs(logits - ref)))

    print("KERNEL_OK")
</pallas_src>

<mosaic_0001>
module attributes {stable_mosaic.version = 11 : i64} {
  func.func @fused_kernel(%arg0: i32, %arg1: memref<8x128xi32, #tpu.memory_space<vmem>>, %arg2: memref<8x128xf32, #tpu.memory_space<vmem>>, %arg3: memref<128x128xf32, #tpu.memory_space<vmem>>, %arg4: memref<128x128xf32, #tpu.memory_space<vmem>>, %arg5: memref<1x128xf32, #tpu.memory_space<vmem>>, %arg6: memref<128x128xf32, #tpu.memory_space<vmem>>, %arg7: memref<1x128xf32, #tpu.memory_space<vmem>>, %arg8: memref<8x128xf32, #tpu.memory_space<vmem>>) attributes {dimension_semantics = [#tpu.dimension_semantics<parallel>], iteration_bounds = array<i64: 1>, scalar_prefetch = 0 : i64, scratch_operands = 0 : i64, tpu.core_type = #tpu.core_type<tc>, window_params = [{transform_indices = @transform_0, window_bounds = array<i64: 8, 128>}, {transform_indices = @transform_1, window_bounds = array<i64: 8, 128>}, {pipeline_mode = #tpu.pipeline_mode<synchronous>, transform_indices = @transform_2, window_bounds = array<i64: 128, 128>}, {pipeline_mode = #tpu.pipeline_mode<synchronous>, transform_indices = @transform_3, window_bounds = array<i64: 128, 128>}, {pipeline_mode = #tpu.pipeline_mode<synchronous>, transform_indices = @transform_4, window_bounds = array<i64: 1, 128>}, {pipeline_mode = #tpu.pipeline_mode<synchronous>, transform_indices = @transform_5, window_bounds = array<i64: 128, 128>}, {pipeline_mode = #tpu.pipeline_mode<synchronous>, transform_indices = @transform_6, window_bounds = array<i64: 1, 128>}, {transform_indices = @transform_7, window_bounds = array<i64: 8, 128>}]} {
    %c0 = arith.constant 0 : index
    %c0_0 = arith.constant 0 : index
    %0 = vector.load %arg1[%c0, %c0_0] : memref<8x128xi32, #tpu.memory_space<vmem>>, vector<8x128xi32>
    %c0_1 = arith.constant 0 : index
    %c0_2 = arith.constant 0 : index
    %1 = vector.load %arg2[%c0_1, %c0_2] : memref<8x128xf32, #tpu.memory_space<vmem>>, vector<8x128xf32>
    %2 = tpu.iota {dimensions = array<i32: 2>} : vector<8x128x128xi32>
    %3 = vector.shape_cast %0 : vector<8x128xi32> to vector<8x128x1xi32>
    %4 = vector.broadcast %3 : vector<8x128x1xi32> to vector<8x128x128xi32>
    %5 = arith.cmpi eq, %2, %4 : vector<8x128x128xi32>
    %6 = vector.shape_cast %1 : vector<8x128xf32> to vector<8x128x1xf32>
    %cst = arith.constant 0.000000e+00 : f32
    %7 = vector.shape_cast %6 : vector<8x128x1xf32> to vector<8x128x1xf32>
    %8 = vector.broadcast %7 : vector<8x128x1xf32> to vector<8x128x128xf32>
    %9 = vector.broadcast %cst : f32 to vector<8x128x128xf32>
    %10 = arith.select %5, %8, %9 : vector<8x128x128xi1>, vector<8x128x128xf32>
    %cst_3 = arith.constant dense<0.000000e+00> : vector<8x128xf32>
    %11 = vector.multi_reduction <add>, %10, %cst_3 [1] : vector<8x128x128xf32> to vector<8x128xf32>
    %c0_4 = arith.constant 0 : index
    %c0_5 = arith.constant 0 : index
    %12 = vector.load %arg3[%c0_4, %c0_5] : memref<128x128xf32, #tpu.memory_space<vmem>>, vector<128x128xf32>
    %cst_6 = arith.constant dense<0.000000e+00> : vector<8x128xf32>
    %13 = tpu.matmul %11, %12, %cst_6 {dimension_numbers = #tpu.dot_dimension_numbers<[1], [0], [0], [1], [0, 0, 1, 1], [], []>} : vector<8x128xf32>, vector<128x128xf32>, vector<8x128xf32> -> vector<8x128xf32>
    %cst_7 = arith.constant dense<0.000000e+00> : vector<8xf32>
    %14 = vector.multi_reduction <add>, %1, %cst_7 [1] : vector<8x128xf32> to vector<8xf32>
    %15 = vector.shape_cast %14 : vector<8xf32> to vector<8x1xf32>
    %cst_8 = arith.constant 1.000000e+00 : f32
    %16 = vector.broadcast %cst_8 : f32 to vector<8x1xf32>
    %17 = arith.maximumf %15, %16 : vector<8x1xf32>
    %18 = tpu.reciprocal %17 : vector<8x1xf32> -> vector<8x1xf32>
    %19 = vector.broadcast %18 : vector<8x1xf32> to vector<8x128xf32>
    %20 = arith.mulf %13, %19 : vector<8x128xf32>
    %c0_9 = arith.constant 0 : index
    %c0_10 = arith.constant 0 : index
    %21 = vector.load %arg4[%c0_9, %c0_10] : memref<128x128xf32, #tpu.memory_space<vmem>>, vector<128x128xf32>
    %cst_11 = arith.constant dense<0.000000e+00> : vector<8x128xf32>
    %22 = tpu.matmul %20, %21, %cst_11 {dimension_numbers = #tpu.dot_dimension_numbers<[1], [0], [0], [1], [0, 0, 1, 1], [], []>} : vector<8x128xf32>, vector<128x128xf32>, vector<8x128xf32> -> vector<8x128xf32>
    %c0_12 = arith.constant 0 : index
    %c0_13 = arith.constant 0 : index
    %23 = vector.load %arg5[%c0_12, %c0_13] : memref<1x128xf32, #tpu.memory_space<vmem>>, vector<1x128xf32>
    %24 = vector.broadcast %23 : vector<1x128xf32> to vector<8x128xf32>
    %25 = arith.addf %22, %24 : vector<8x128xf32>
    %26 = math.tanh %25 : vector<8x128xf32>
    %c0_14 = arith.constant 0 : index
    %c0_15 = arith.constant 0 : index
    %27 = vector.load %arg6[%c0_14, %c0_15] : memref<128x128xf32, #tpu.memory_space<vmem>>, vector<128x128xf32>
    %cst_16 = arith.constant dense<0.000000e+00> : vector<8x128xf32>
    %28 = tpu.matmul %26, %27, %cst_16 {dimension_numbers = #tpu.dot_dimension_numbers<[1], [0], [0], [1], [0, 0, 1, 1], [], []>} : vector<8x128xf32>, vector<128x128xf32>, vector<8x128xf32> -> vector<8x128xf32>
    %c0_17 = arith.constant 0 : index
    %c0_18 = arith.constant 0 : index
    %29 = vector.load %arg7[%c0_17, %c0_18] : memref<1x128xf32, #tpu.memory_space<vmem>>, vector<1x128xf32>
    %30 = vector.broadcast %29 : vector<1x128xf32> to vector<8x128xf32>
    %31 = arith.addf %28, %30 : vector<8x128xf32>
    %c0_19 = arith.constant 0 : index
    %c0_20 = arith.constant 0 : index
    %32 = vector.load %arg8[%c0_19, %c0_20] : memref<8x128xf32, #tpu.memory_space<vmem>>, vector<8x128xf32>
    tpu.vector_store %arg8[%c0_19, %c0_20], %31 {strides = array<i32>} : memref<8x128xf32, #tpu.memory_space<vmem>>, vector<8x128xf32>,
    return
  }
  func.func @transform_0(%arg0: i32) -> (i32, i32) {
    %c0_i32 = arith.constant 0 : i32
    %c0_i32_0 = arith.constant 0 : i32
    return %arg0, %c0_i32 : i32, i32
  }
  func.func @transform_1(%arg0: i32) -> (i32, i32) {
    %c0_i32 = arith.constant 0 : i32
    %c0_i32_0 = arith.constant 0 : i32
    return %arg0, %c0_i32 : i32, i32
  }
  func.func @transform_2(%arg0: i32) -> (i32, i32) {
    %c0_i32 = arith.constant 0 : i32
    %c0_i32_0 = arith.constant 0 : i32
    %c0_i32_1 = arith.constant 0 : i32
    return %c0_i32, %c0_i32_0 : i32, i32
  }
  func.func @transform_3(%arg0: i32) -> (i32, i32) {
    %c0_i32 = arith.constant 0 : i32
    %c0_i32_0 = arith.constant 0 : i32
    %c0_i32_1 = arith.constant 0 : i32
    return %c0_i32, %c0_i32_0 : i32, i32
  }
  func.func @transform_4(%arg0: i32) -> (i32, i32) {
    %c0_i32 = arith.constant 0 : i32
    %c0_i32_0 = arith.constant 0 : i32
    %c0_i32_1 = arith.constant 0 : i32
    return %c0_i32, %c0_i32_0 : i32, i32
  }
  func.func @transform_5(%arg0: i32) -> (i32, i32) {
    %c0_i32 = arith.constant 0 : i32
    %c0_i32_0 = arith.constant 0 : i32
    %c0_i32_1 = arith.constant 0 : i32
    return %c0_i32, %c0_i32_0 : i32, i32
  }
  func.func @transform_6(%arg0: i32) -> (i32, i32) {
    %c0_i32 = arith.constant 0 : i32
    %c0_i32_0 = arith.constant 0 : i32
    %c0_i32_1 = arith.constant 0 : i32
    return %c0_i32, %c0_i32_0 : i32, i32
  }
  func.func @transform_7(%arg0: i32) -> (i32, i32) {
    %c0_i32 = arith.constant 0 : i32
    %c0_i32_0 = arith.constant 0 : i32
    return %arg0, %c0_i32 : i32, i32
  }
}

</mosaic_0001>

<llo_original>
// kernel: tpu_custom_call.1
$region0: #{tpu_custom_call.1}
  #allocation0 [shape = 'u32[]', space=smem, size = 0x4, offset = 0x4, fixed_abs, tag = 'smem constant byte address 0x4 - core index']
  #allocation1 [shape = 'u32[144,128]{1,0:T(1,128)}', space=vmem, size = 0x12000, scoped, tag = 'internal scratch']
  %s0 = inlined_call_operand.hbm [shape: s32[8,128], index: 0, kind: input, shape index: {}]
  %s1 = inlined_call_operand.hbm [shape: f32[8,128], index: 1, kind: input, shape index: {}]
  %s2 = inlined_call_operand.hbm [shape: f32[128,128], index: 2, kind: input, shape index: {}]
  %s3 = inlined_call_operand.hbm [shape: f32[128,128], index: 3, kind: input, shape index: {}]
  %s4 = inlined_call_operand.vmem [shape: f32[1,128], index: 4, kind: input, shape index: {}]
  %s5 = inlined_call_operand.hbm [shape: f32[128,128], index: 5, kind: input, shape index: {}]
  %s6 = inlined_call_operand.vmem [shape: f32[1,128], index: 6, kind: input, shape index: {}]
  %s7 = inlined_call_operand.hbm [shape: f32[8,128], index: 7, kind: output, shape index: {}]
  %s8 = sld [smem:[#allocation0]]
  $region58: #{tpu_custom_call.1} parent=0
    _
  %s10 = ssub.s32 1, %s8
  %s11 = scalar_select 0, %s10, %s8
  $region1: #{tpu_custom_call.1} parent=0
    #allocation2 [shape = 'u8[4096]{0}', space=vmem, size = 0x1000, scoped, tag = 'input window, operand 0, single buffered']
    #allocation3 [shape = 's32[1]{0}', space=sflag, size = 0x4, scoped, tag = 'scoped memory for tpu_custom_call.1']
    #allocation4 [shape = 's32[1]{0}', space=sflag, size = 0x4, scoped, tag = 'scoped memory for tpu_custom_call.1']
    #allocation5 [shape = 'u8[4096]{0}', space=vmem, size = 0x1000, scoped, tag = 'input window, operand 1, single buffered']
    #allocation6 [shape = 's32[1]{0}', space=sflag, size = 0x4, scoped, tag = 'scoped memory for tpu_custom_call.1']
    #allocation7 [shape = 'u8[65536]{0}', space=vmem, size = 0x10000, scoped, tag = 'input window, operand 2, single buffered']
    #allocation8 [shape = 'u8[65536]{0}', space=vmem, size = 0x10000, scoped, tag = 'input window, operand 3, single buffered']
    #allocation9 [shape = 's32[1]{0}', space=sflag, size = 0x4, scoped, tag = 'scoped memory for tpu_custom_call.1']
    #allocation10 [shape = 'u8[65536]{0}', space=vmem, size = 0x10000, scoped, tag = 'input window, operand 5, single buffered']
    #allocation11 [shape = 'u8[4096]{0}', space=vmem, size = 0x1000, scoped, tag = 'output window, operand 0, single buffered']
    %12 = vsyncpa [#allocation3], 0
    %13 = vsyncpa [#allocation6], 0
    %14 = vsyncpa [#allocation9], 0
    %15 = vsyncpa [#allocation4], 0
    // Predicated region
    $region2: #{tpu_custom_call.1} parent=1 // pred_check
      _
    $region3: #{tpu_custom_call.1} parent=1 // pred_check_branch
      %17 = sbr.rel (0) target = $region5
    $region4: #{tpu_custom_call.1} parent=1 // pred_region
      %s19 = ssub.s32 128, 128
      %20 = vsyncadd [#allocation3], %s19
      %s22 = sshll.u32 [#allocation2], 4
      %s23 = int_to_ptr.vmem [resolvable:$true] %s22
      %25 = dma.hbm_to_vmem [thread:$0]  %s0, 128, %s23, [#allocation3]
    $region5: #{tpu_custom_call.1} parent=1 // pred_fallthru
      _
    // Predicated region
    $region6: #{tpu_custom_call.1} parent=1 // pred_check
      _
    $region7: #{tpu_custom_call.1} parent=1 // pred_check_branch
      %27 = sbr.rel (0) target = $region9
    $region8: #{tpu_custom_call.1} parent=1 // pred_region
      %s29 = ssub.s32 128, 128
      %30 = vsyncadd [#allocation6], %s29
      %s32 = sshll.u32 [#allocation5], 4
      %s33 = int_to_ptr.vmem [resolvable:$true] %s32
      %35 = dma.hbm_to_vmem [thread:$0]  %s1, 128, %s33, [#allocation6]
    $region9: #{tpu_custom_call.1} parent=1 // pred_fallthru
      _
    // Predicated region
    $region10: #{tpu_custom_call.1} parent=1 // pred_check
      _
    $region11: #{tpu_custom_call.1} parent=1 // pred_check_branch
      %37 = sbr.rel (0) target = $region13
    $region12: #{tpu_custom_call.1} parent=1 // pred_region
      %s39 = ssub.s32 2048, 2048
      %40 = vsyncadd [#allocation6], %s39
      %s41 = sshll.u32 [#allocation7], 4
      %s42 = int_to_ptr.vmem [resolvable:$true] %s41
      %47 = dma.hbm_to_vmem [thread:$0]  %s2, 2048, %s42, [#allocation6], 128, 128, 8
    $region13: #{tpu_custom_call.1} parent=1 // pred_fallthru
      _
    // Predicated region
    $region14: #{tpu_custom_call.1} parent=1 // pred_check
      _
    $region15: #{tpu_custom_call.1} parent=1 // pred_check_branch
      %49 = sbr.rel (0) target = $region17
    $region16: #{tpu_custom_call.1} parent=1 // pred_region
      %s51 = ssub.s32 2048, 2048
      %52 = vsyncadd [#allocation9], %s51
      %s53 = sshll.u32 [#allocation8], 4
      %s54 = int_to_ptr.vmem [resolvable:$true] %s53
      %59 = dma.hbm_to_vmem [thread:$0]  %s3, 2048, %s54, [#allocation9], 128, 128, 8
    $region17: #{tpu_custom_call.1} parent=1 // pred_fallthru
      _
    // Predicated region
    $region18: #{tpu_custom_call.1} parent=1 // pred_check
      _
    $region19: #{tpu_custom_call.1} parent=1 // pred_check_branch
      %61 = sbr.rel (0) target = $region21
    $region20: #{tpu_custom_call.1} parent=1 // pred_region
      _
    $region21: #{tpu_custom_call.1} parent=1 // pred_fallthru
      _
    // Predicated region
    $region22: #{tpu_custom_call.1} parent=1 // pred_check
      _
    $region23: #{tpu_custom_call.1} parent=1 // pred_check_branch
      %63 = sbr.rel (0) target = $region25
    $region24: #{tpu_custom_call.1} parent=1 // pred_region
      %s65 = ssub.s32 2048, 2048
      %66 = vsyncadd [#allocation9], %s65
      %s67 = sshll.u32 [#allocation10], 4
      %s68 = int_to_ptr.vmem [resolvable:$true] %s67
      %73 = dma.hbm_to_vmem [thread:$0]  %s5, 2048, %s68, [#allocation9], 128, 128, 8
    $region25: #{tpu_custom_call.1} parent=1 // pred_fallthru
      _
    // Predicated region
    $region26: #{tpu_custom_call.1} parent=1 // pred_check
      _
    $region27: #{tpu_custom_call.1} parent=1 // pred_check_branch
      %75 = sbr.rel (0) target = $region29
    $region28: #{tpu_custom_call.1} parent=1 // pred_region
      _
    $region29: #{tpu_custom_call.1} parent=1 // pred_fallthru
      _
    // Predicated region
    $region30: #{tpu_custom_call.1} parent=1 // pred_check
      _
    $region31: #{tpu_custom_call.1} parent=1 // pred_check_branch
      %77 = sbr.rel (0) target = $region33
    $region32: #{tpu_custom_call.1} parent=1 // pred_region
      %78 = dma.done [#allocation3], 128
    $region33: #{tpu_custom_call.1} parent=1 // pred_fallthru
      _
    // Predicated region
    $region34: #{tpu_custom_call.1} parent=1 // pred_check
      _
    $region35: #{tpu_custom_call.1} parent=1 // pred_check_branch
      %80 = sbr.rel (0) target = $region37
    $region36: #{tpu_custom_call.1} parent=1 // pred_region
      %81 = dma.done [#allocation6], 128
    $region37: #{tpu_custom_call.1} parent=1 // pred_fallthru
      _
    // Predicated region
    $region38: #{tpu_custom_call.1} parent=1 // pred_check
      _
    $region39: #{tpu_custom_call.1} parent=1 // pred_check_branch
      %83 = sbr.rel (0) target = $region41
    $region40: #{tpu_custom_call.1} parent=1 // pred_region
      %84 = dma.done [#allocation6], 2048
    $region41: #{tpu_custom_call.1} parent=1 // pred_fallthru
      _
    // Predicated region
    $region42: #{tpu_custom_call.1} parent=1 // pred_check
      _
    $region43: #{tpu_custom_call.1} parent=1 // pred_check_branch
      %86 = sbr.rel (0) target = $region45
    $region44: #{tpu_custom_call.1} parent=1 // pred_region
      %87 = dma.done [#allocation9], 2048
    $region45: #{tpu_custom_call.1} parent=1 // pred_fallthru
      _
    // Predicated region
    $region46: #{tpu_custom_call.1} parent=1 // pred_check
      _
    $region47: #{tpu_custom_call.1} parent=1 // pred_check_branch
      %89 = sbr.rel (0) target = $region49
    $region48: #{tpu_custom_call.1} parent=1 // pred_region
      %90 = dma.done [#allocation9], 2048
    $region49: #{tpu_custom_call.1} parent=1 // pred_fallthru
      _
    %v91 = vld [vmem:[#allocation2] sm:$0xff]
    %v92 = vld [vmem:[#allocation5] sm:$0xff]
    %v93 = vlaneseq
    %v94 = vand.u32 %v93, 127
    %v95 = vlaneseq
    %v96 = vshrl.u32 %v95, 7
    %v97 = vsub.s32 0, %v96
    %v98 = vrot.slane %v91, %v97
    %100 = vbcast.lane.b32.xlu0 %v98, 256
    %v101 = vpop.permute.xlu0 %100
    %s103 = sor.u32 256, 8
    %104 = vbcast.lane.b32.xlu0 %v98, %s103
    %v105 = vpop.permute.xlu0 %104
    %s107 = sor.u32 256, 16
    %108 = vbcast.lane.b32.xlu0 %v98, %s107
    %v109 = vpop.permute.xlu0 %108
    %s111 = sor.u32 256, 24
    %112 = vbcast.lane.b32.xlu0 %v98, %s111
    %v113 = vpop.permute.xlu0 %112
    %s115 = sor.u32 256, 32
    %116 = vbcast.lane.b32.xlu0 %v98, %s115
    %v117 = vpop.permute.xlu0 %116
    %s119 = sor.u32 256, 40
    %120 = vbcast.lane.b32.xlu0 %v98, %s119
    %v121 = vpop.permute.xlu0 %120
    %s123 = sor.u32 256, 48
    %124 = vbcast.lane.b32.xlu0 %v98, %s123
    %v125 = vpop.permute.xlu0 %124
    %s127 = sor.u32 256, 56
    %128 = vbcast.lane.b32.xlu0 %v98, %s127
    %v129 = vpop.permute.xlu0 %128
    %s131 = sor.u32 256, 64
    %132 = vbcast.lane.b32.xlu0 %v98, %s131
    %v133 = vpop.permute.xlu0 %132
    %s135 = sor.u32 256, 72
    %136 = vbcast.lane.b32.xlu0 %v98, %s135
    %v137 = vpop.permute.xlu0 %136
    %s139 = sor.u32 256, 80
    %140 = vbcast.lane.b32.xlu0 %v98, %s139
    %v141 = vpop.permute.xlu0 %140
    %s143 = sor.u32 256, 88
    %144 = vbcast.lane.b32.xlu0 %v98, %s143
    %v145 = vpop.permute.xlu0 %144
    %s147 = sor.u32 256, 96
    %148 = vbcast.lane.b32.xlu0 %v98, %s147
    %v149 = vpop.permute.xlu0 %148
    %s151 = sor.u32 256, 104
    %152 = vbcast.lane.b32.xlu0 %v98, %s151
    %v153 = vpop.permute.xlu0 %152
    %s155 = sor.u32 256, 112
    %156 = vbcast.lane.b32.xlu0 %v98, %s155
    %v157 = vpop.permute.xlu0 %156
    %s159 = sor.u32 256, 120
    %160 = vbcast.lane.b32.xlu0 %v98, %s159
    %v161 = vpop.permute.xlu0 %160
    %v162 = vlaneseq
    %v163 = vshrl.u32 %v162, 7
    %v164 = vsub.s32 1, %v163
    %v165 = vrot.slane %v91, %v164
    %167 = vbcast.lane.b32.xlu0 %v165, 256
    %v168 = vpop.permute.xlu0 %167
    %s170 = sor.u32 256, 8
    %171 = vbcast.lane.b32.xlu0 %v165, %s170
    %v172 = vpop.permute.xlu0 %171
    %s174 = sor.u32 256, 16
    %175 = vbcast.lane.b32.xlu0 %v165, %s174
    %v176 = vpop.permute.xlu0 %175
    %s178 = sor.u32 256, 24
    %179 = vbcast.lane.b32.xlu0 %v165, %s178
    %v180 = vpop.permute.xlu0 %179
    %s182 = sor.u32 256, 32
    %183 = vbcast.lane.b32.xlu0 %v165, %s182
    %v184 = vpop.permute.xlu0 %183
    %s186 = sor.u32 256, 40
    %187 = vbcast.lane.b32.xlu0 %v165, %s186
    %v188 = vpop.permute.xlu0 %187
    %s190 = sor.u32 256, 48
    %191 = vbcast.lane.b32.xlu0 %v165, %s190
    %v192 = vpop.permute.xlu0 %191
    %s194 = sor.u32 256, 56
    %195 = vbcast.lane.b32.xlu0 %v165, %s194
    %v196 = vpop.permute.xlu0 %195
    %s198 = sor.u32 256, 64
    %199 = vbcast.lane.b32.xlu0 %v165, %s198
    %v200 = vpop.permute.xlu0 %199
    %s202 = sor.u32 256, 72
    %203 = vbcast.lane.b32.xlu0 %v165, %s202
    %v204 = vpop.permute.xlu0 %203
    %s206 = sor.u32 256, 80
    %207 = vbcast.lane.b32.xlu0 %v165, %s206
    %v208 = vpop.permute.xlu0 %207
    %s210 = sor.u32 256, 88
    %211 = vbcast.lane.b32.xlu0 %v165, %s210
    %v212 = vpop.permute.xlu0 %211
    %s214 = sor.u32 256, 96
    %215 = vbcast.lane.b32.xlu0 %v165, %s214
    %v216 = vpop.permute.xlu0 %215
    %s218 = sor.u32 256, 104
    %219 = vbcast.lane.b32.xlu0 %v165, %s218
    %v220 = vpop.permute.xlu0 %219
    %s222 = sor.u32 256, 112
    %223 = vbcast.lane.b32.xlu0 %v165, %s222
    %v224 = vpop.permute.xlu0 %223
    %s226 = sor.u32 256, 120
    %227 = vbcast.lane.b32.xlu0 %v165, %s226
    %v228 = vpop.permute.xlu0 %227
    %v229 = vlaneseq
    %v230 = vshrl.u32 %v229, 7
    %v231 = vsub.s32 2, %v230
    %v232 = vrot.slane %v91, %v231
    %234 = vbcast.lane.b32.xlu0 %v232, 256
    %v235 = vpop.permute.xlu0 %234
    %s237 = sor.u32 256, 8
    %238 = vbcast.lane.b32.xlu0 %v232, %s237
    %v239 = vpop.permute.xlu0 %238
    %s241 = sor.u32 256, 16
    %242 = vbcast.lane.b32.xlu0 %v232, %s241
    %v243 = vpop.permute.xlu0 %242
    %s245 = sor.u32 256, 24
    %246 = vbcast.lane.b32.xlu0 %v232, %s245
    %v247 = vpop.permute.xlu0 %246
    %s249 = sor.u32 256, 32
    %250 = vbcast.lane.b32.xlu0 %v232, %s249
    %v251 = vpop.permute.xlu0 %250
    %s253 = sor.u32 256, 40
    %254 = vbcast.lane.b32.xlu0 %v232, %s253
    %v255 = vpop.permute.xlu0 %254
    %s257 = sor.u32 256, 48
    %258 = vbcast.lane.b32.xlu0 %v232, %s257
    %v259 = vpop.permute.xlu0 %258
    %s261 = sor.u32 256, 56
    %262 = vbcast.lane.b32.xlu0 %v232, %s261
    %v263 = vpop.permute.xlu0 %262
    %s265 = sor.u32 256, 64
    %266 = vbcast.lane.b32.xlu0 %v232, %s265
    %v267 = vpop.permute.xlu0 %266
    %s269 = sor.u32 256, 72
    %270 = vbcast.lane.b32.xlu0 %v232, %s269
    %v271 = vpop.permute.xlu0 %270
    %s273 = sor.u32 256, 80
    %274 = vbcast.lane.b32.xlu0 %v232, %s273
    %v275 = vpop.permute.xlu0 %274
    %s277 = sor.u32 256, 88
    %278 = vbcast.lane.b32.xlu0 %v232, %s277
    %v279 = vpop.permute.xlu0 %278
    %s281 = sor.u32 256, 96
    %282 = vbcast.lane.b32.xlu0 %v232, %s281
    %v283 = vpop.permute.xlu0 %282
    %s285 = sor.u32 256, 104
    %286 = vbcast.lane.b32.xlu0 %v232, %s285
    %v287 = vpop.permute.xlu0 %286
    %s289 = sor.u32 256, 112
    %290 = vbcast.lane.b32.xlu0 %v232, %s289
    %v291 = vpop.permute.xlu0 %290
    %s293 = sor.u32 256, 120
    %294 = vbcast.lane.b32.xlu0 %v232, %s293
    %v295 = vpop.permute.xlu0 %294
    %v296 = vlaneseq
    %v297 = vshrl.u32 %v296, 7
    %v298 = vsub.s32 3, %v297
    %v299 = vrot.slane %v91, %v298
    %301 = vbcast.lane.b32.xlu0 %v299, 256
    %v302 = vpop.permute.xlu0 %301
    %s304 = sor.u32 256, 8
    %305 = vbcast.lane.b32.xlu0 %v299, %s304
    %v306 = vpop.permute.xlu0 %305
    %s308 = sor.u32 256, 16
    %309 = vbcast.lane.b32.xlu0 %v299, %s308
    %v310 = vpop.permute.xlu0 %309
    %s312 = sor.u32 256, 24
    %313 = vbcast.lane.b32.xlu0 %v299, %s312
    %v314 = vpop.permute.xlu0 %313
    %s316 = sor.u32 256, 32
    %317 = vbcast.lane.b32.xlu0 %v299, %s316
    %v318 = vpop.permute.xlu0 %317
    %s320 = sor.u32 256, 40
    %321 = vbcast.lane.b32.xlu0 %v299, %s320
    %v322 = vpop.permute.xlu0 %321
    %s324 = sor.u32 256, 48
    %325 = vbcast.lane.b32.xlu0 %v299, %s324
    %v326 = vpop.permute.xlu0 %325
    %s328 = sor.u32 256, 56
    %329 = vbcast.lane.b32.xlu0 %v299, %s328
    %v330 = vpop.permute.xlu0 %329
    %s332 = sor.u32 256, 64
    %333 = vbcast.lane.b32.xlu0 %v299, %s332
    %v334 = vpop.permute.xlu0 %333
    %s336 = sor.u32 256, 72
    %337 = vbcast.lane.b32.xlu0 %v299, %s336
    %v338 = vpop.permute.xlu0 %337
    %s340 = sor.u32 256, 80
    %341 = vbcast.lane.b32.xlu0 %v299, %s340
    %v342 = vpop.permute.xlu0 %341
    %s344 = sor.u32 256, 88
    %345 = vbcast.lane.b32.xlu0 %v299, %s344
    %v346 = vpop.permute.xlu0 %345
    %s348 = sor.u32 256, 96
    %349 = vbcast.lane.b32.xlu0 %v299, %s348
    %v350 = vpop.permute.xlu0 %349
    %s352 = sor.u32 256, 104
    %353 = vbcast.lane.b32.xlu0 %v299, %s352
    %v354 = vpop.permute.xlu0 %353
    %s356 = sor.u32 256, 112
    %357 = vbcast.lane.b32.xlu0 %v299, %s356
    %v358 = vpop.permute.xlu0 %357
    %s360 = sor.u32 256, 120
    %361 = vbcast.lane.b32.xlu0 %v299, %s360
    %v362 = vpop.permute.xlu0 %361
    %v363 = vlaneseq
    %v364 = vshrl.u32 %v363, 7
    %v365 = vsub.s32 4, %v364
    %v366 = vrot.slane %v91, %v365
    %368 = vbcast.lane.b32.xlu0 %v366, 256
    %v369 = vpop.permute.xlu0 %368
    %s371 = sor.u32 256, 8
    %372 = vbcast.lane.b32.xlu0 %v366, %s371
    %v373 = vpop.permute.xlu0 %372
    %s375 = sor.u32 256, 16
    %376 = vbcast.lane.b32.xlu0 %v366, %s375
    %v377 = vpop.permute.xlu0 %376
    %s379 = sor.u32 256, 24
    %380 = vbcast.lane.b32.xlu0 %v366, %s379
    %v381 = vpop.permute.xlu0 %380
    %s383 = sor.u32 256, 32
    %384 = vbcast.lane.b32.xlu0 %v366, %s383
    %v385 = vpop.permute.xlu0 %384
    %s387 = sor.u32 256, 40
    %388 = vbcast.lane.b32.xlu0 %v366, %s387
    %v389 = vpop.permute.xlu0 %388
    %s391 = sor.u32 256, 48
    %392 = vbcast.lane.b32.xlu0 %v366, %s391
    %v393 = vpop.permute.xlu0 %392
    %s395 = sor.u32 256, 56
    %396 = vbcast.lane.b32.xlu0 %v366, %s395
    %v397 = vpop.permute.xlu0 %396
    %s399 = sor.u32 256, 64
    %400 = vbcast.lane.b32.xlu0 %v366, %s399
    %v401 = vpop.permute.xlu0 %400
    %s403 = sor.u32 256, 72
    %404 = vbcast.lane.b32.xlu0 %v366, %s403
    %v405 = vpop.permute.xlu0 %404
    %s407 = sor.u32 256, 80
    %408 = vbcast.lane.b32.xlu0 %v366, %s407
    %v409 = vpop.permute.xlu0 %408
    %s411 = sor.u32 256, 88
    %412 = vbcast.lane.b32.xlu0 %v366, %s411
    %v413 = vpop.permute.xlu0 %412
    %s415 = sor.u32 256, 96
    %416 = vbcast.lane.b32.xlu0 %v366, %s415
    %v417 = vpop.permute.xlu0 %416
    %s419 = sor.u32 256, 104
    %420 = vbcast.lane.b32.xlu0 %v366, %s419
    %v421 = vpop.permute.xlu0 %420
    %s423 = sor.u32 256, 112
    %424 = vbcast.lane.b32.xlu0 %v366, %s423
    %v425 = vpop.permute.xlu0 %424
    %s427 = sor.u32 256, 120
    %428 = vbcast.lane.b32.xlu0 %v366, %s427
    %v429 = vpop.permute.xlu0 %428
    %v430 = vlaneseq
    %v431 = vshrl.u32 %v430, 7
    %v432 = vsub.s32 5, %v431
    %v433 = vrot.slane %v91, %v432
    %435 = vbcast.lane.b32.xlu0 %v433, 256
    %v436 = vpop.permute.xlu0 %435
    %s438 = sor.u32 256, 8
    %439 = vbcast.lane.b32.xlu0 %v433, %s438
    %v440 = vpop.permute.xlu0 %439
    %s442 = sor.u32 256, 16
    %443 = vbcast.lane.b32.xlu0 %v433, %s442
    %v444 = vpop.permute.xlu0 %443
    %s446 = sor.u32 256, 24
    %447 = vbcast.lane.b32.xlu0 %v433, %s446
    %v448 = vpop.permute.xlu0 %447
    %s450 = sor.u32 256, 32
    %451 = vbcast.lane.b32.xlu0 %v433, %s450
    %v452 = vpop.permute.xlu0 %451
    %s454 = sor.u32 256, 40
    %455 = vbcast.lane.b32.xlu0 %v433, %s454
    %v456 = vpop.permute.xlu0 %455
    %s458 = sor.u32 256, 48
    %459 = vbcast.lane.b32.xlu0 %v433, %s458
    %v460 = vpop.permute.xlu0 %459
    %s462 = sor.u32 256, 56
    %463 = vbcast.lane.b32.xlu0 %v433, %s462
    %v464 = vpop.permute.xlu0 %463
    %s466 = sor.u32 256, 64
    %467 = vbcast.lane.b32.xlu0 %v433, %s466
    %v468 = vpop.permute.xlu0 %467
    %s470 = sor.u32 256, 72
    %471 = vbcast.lane.b32.xlu0 %v433, %s470
    %v472 = vpop.permute.xlu0 %471
    %s474 = sor.u32 256, 80
    %475 = vbcast.lane.b32.xlu0 %v433, %s474
    %v476 = vpop.permute.xlu0 %475
    %s478 = sor.u32 256, 88
    %479 = vbcast.lane.b32.xlu0 %v433, %s478
    %v480 = vpop.permute.xlu0 %479
    %s482 = sor.u32 256, 96
    %483 = vbcast.lane.b32.xlu0 %v433, %s482
    %v484 = vpop.permute.xlu0 %483
    %s486 = sor.u32 256, 104
    %487 = vbcast.lane.b32.xlu0 %v433, %s486
    %v488 = vpop.permute.xlu0 %487
    %s490 = sor.u32 256, 112
    %491 = vbcast.lane.b32.xlu0 %v433, %s490
    %v492 = vpop.permute.xlu0 %491
    %s494 = sor.u32 256, 120
    %495 = vbcast.lane.b32.xlu0 %v433, %s494
    %v496 = vpop.permute.xlu0 %495
    %v497 = vlaneseq
    %v498 = vshrl.u32 %v497, 7
    %v499 = vsub.s32 6, %v498
    %v500 = vrot.slane %v91, %v499
    %502 = vbcast.lane.b32.xlu0 %v500, 256
    %v503 = vpop.permute.xlu0 %502
    %s505 = sor.u32 256, 8
    %506 = vbcast.lane.b32.xlu0 %v500, %s505
    %v507 = vpop.permute.xlu0 %506
    %s509 = sor.u32 256, 16
    %510 = vbcast.lane.b32.xlu0 %v500, %s509
    %v511 = vpop.permute.xlu0 %510
    %s513 = sor.u32 256, 24
    %514 = vbcast.lane.b32.xlu0 %v500, %s513
    %v515 = vpop.permute.xlu0 %514
    %s517 = sor.u32 256, 32
    %518 = vbcast.lane.b32.xlu0 %v500, %s517
    %v519 = vpop.permute.xlu0 %518
    %s521 = sor.u32 256, 40
    %522 = vbcast.lane.b32.xlu0 %v500, %s521
    %v523 = vpop.permute.xlu0 %522
    %s525 = sor.u32 256, 48
    %526 = vbcast.lane.b32.xlu0 %v500, %s525
    %v527 = vpop.permute.xlu0 %526
    %s529 = sor.u32 256, 56
    %530 = vbcast.lane.b32.xlu0 %v500, %s529
    %v531 = vpop.permute.xlu0 %530
    %s533 = sor.u32 256, 64
    %534 = vbcast.lane.b32.xlu0 %v500, %s533
    %v535 = vpop.permute.xlu0 %534
    %s537 = sor.u32 256, 72
    %538 = vbcast.lane.b32.xlu0 %v500, %s537
    %v539 = vpop.permute.xlu0 %538
    %s541 = sor.u32 256, 80
    %542 = vbcast.lane.b32.xlu0 %v500, %s541
    %v543 = vpop.permute.xlu0 %542
    %s545 = sor.u32 256, 88
    %546 = vbcast.lane.b32.xlu0 %v500, %s545
    %v547 = vpop.permute.xlu0 %546
    %s549 = sor.u32 256, 96
    %550 = vbcast.lane.b32.xlu0 %v500, %s549
    %v551 = vpop.permute.xlu0 %550
    %s553 = sor.u32 256, 104
    %554 = vbcast.lane.b32.xlu0 %v500, %s553
    %v555 = vpop.permute.xlu0 %554
    %s557 = sor.u32 256, 112
    %558 = vbcast.lane.b32.xlu0 %v500, %s557
    %v559 = vpop.permute.xlu0 %558
    %s561 = sor.u32 256, 120
    %562 = vbcast.lane.b32.xlu0 %v500, %s561
    %v563 = vpop.permute.xlu0 %562
    %v564 = vlaneseq
    %v565 = vshrl.u32 %v564, 7
    %v566 = vsub.s32 7, %v565
    %v567 = vrot.slane %v91, %v566
    %569 = vbcast.lane.b32.xlu0 %v567, 256
    %v570 = vpop.permute.xlu0 %569
    %s572 = sor.u32 256, 8
    %573 = vbcast.lane.b32.xlu0 %v567, %s572
    %v574 = vpop.permute.xlu0 %573
    %s576 = sor.u32 256, 16
    %577 = vbcast.lane.b32.xlu0 %v567, %s576
    %v578 = vpop.permute.xlu0 %577
    %s580 = sor.u32 256, 24
    %581 = vbcast.lane.b32.xlu0 %v567, %s580
    %v582 = vpop.permute.xlu0 %581
    %s584 = sor.u32 256, 32
    %585 = vbcast.lane.b32.xlu0 %v567, %s584
    %v586 = vpop.permute.xlu0 %585
    %s588 = sor.u32 256, 40
    %589 = vbcast.lane.b32.xlu0 %v567, %s588
    %v590 = vpop.permute.xlu0 %589
    %s592 = sor.u32 256, 48
    %593 = vbcast.lane.b32.xlu0 %v567, %s592
    %v594 = vpop.permute.xlu0 %593
    %s596 = sor.u32 256, 56
    %597 = vbcast.lane.b32.xlu0 %v567, %s596
    %v598 = vpop.permute.xlu0 %597
    %s600 = sor.u32 256, 64
    %601 = vbcast.lane.b32.xlu0 %v567, %s600
    %v602 = vpop.permute.xlu0 %601
    %s604 = sor.u32 256, 72
    %605 = vbcast.lane.b32.xlu0 %v567, %s604
    %v606 = vpop.permute.xlu0 %605
    %s608 = sor.u32 256, 80
    %609 = vbcast.lane.b32.xlu0 %v567, %s608
    %v610 = vpop.permute.xlu0 %609
    %s612 = sor.u32 256, 88
    %613 = vbcast.lane.b32.xlu0 %v567, %s612
    %v614 = vpop.permute.xlu0 %613
    %s616 = sor.u32 256, 96
    %617 = vbcast.lane.b32.xlu0 %v567, %s616
    %v618 = vpop.permute.xlu0 %617
    %s620 = sor.u32 256, 104
    %621 = vbcast.lane.b32.xlu0 %v567, %s620
    %v622 = vpop.permute.xlu0 %621
    %s624 = sor.u32 256, 112
    %625 = vbcast.lane.b32.xlu0 %v567, %s624
    %v626 = vpop.permute.xlu0 %625
    %s628 = sor.u32 256, 120
    %629 = vbcast.lane.b32.xlu0 %v567, %s628
    %v630 = vpop.permute.xlu0 %629
    %vm631 = vcmp.eq.s32.totalorder %v94, %v101
    %vm632 = vcmp.eq.s32.totalorder %v94, %v105
    %vm633 = vcmp.eq.s32.totalorder %v94, %v109
    %vm634 = vcmp.eq.s32.totalorder %v94, %v113
    %vm635 = vcmp.eq.s32.totalorder %v94, %v117
    %vm636 = vcmp.eq.s32.totalorder %v94, %v121
    %vm637 = vcmp.eq.s32.totalorder %v94, %v125
    %vm638 = vcmp.eq.s32.totalorder %v94, %v129
    %vm639 = vcmp.eq.s32.totalorder %v94, %v133
    %vm640 = vcmp.eq.s32.totalorder %v94, %v137
    %vm641 = vcmp.eq.s32.totalorder %v94, %v141
    %vm642 = vcmp.eq.s32.totalorder %v94, %v145
    %vm643 = vcmp.eq.s32.totalorder %v94, %v149
    %vm644 = vcmp.eq.s32.totalorder %v94, %v153
    %vm645 = vcmp.eq.s32.totalorder %v94, %v157
    %vm646 = vcmp.eq.s32.totalorder %v94, %v161
    %vm647 = vcmp.eq.s32.totalorder %v94, %v168
    %vm648 = vcmp.eq.s32.totalorder %v94, %v172
    %vm649 = vcmp.eq.s32.totalorder %v94, %v176
    %vm650 = vcmp.eq.s32.totalorder %v94, %v180
    %vm651 = vcmp.eq.s32.totalorder %v94, %v184
    %vm652 = vcmp.eq.s32.totalorder %v94, %v188
    %vm653 = vcmp.eq.s32.totalorder %v94, %v192
    %vm654 = vcmp.eq.s32.totalorder %v94, %v196
    %vm655 = vcmp.eq.s32.totalorder %v94, %v200
    %vm656 = vcmp.eq.s32.totalorder %v94, %v204
    %vm657 = vcmp.eq.s32.totalorder %v94, %v208
    %vm658 = vcmp.eq.s32.totalorder %v94, %v212
    %vm659 = vcmp.eq.s32.totalorder %v94, %v216
    %vm660 = vcmp.eq.s32.totalorder %v94, %v220
    %vm661 = vcmp.eq.s32.totalorder %v94, %v224
    %vm662 = vcmp.eq.s32.totalorder %v94, %v228
    %vm663 = vcmp.eq.s32.totalorder %v94, %v235
    %vm664 = vcmp.eq.s32.totalorder %v94, %v239
    %vm665 = vcmp.eq.s32.totalorder %v94, %v243
    %vm666 = vcmp.eq.s32.totalorder %v94, %v247
    %vm667 = vcmp.eq.s32.totalorder %v94, %v251
    %vm668 = vcmp.eq.s32.totalorder %v94, %v255
    %vm669 = vcmp.eq.s32.totalorder %v94, %v259
    %vm670 = vcmp.eq.s32.totalorder %v94, %v263
    %vm671 = vcmp.eq.s32.totalorder %v94, %v267
    %vm672 = vcmp.eq.s32.totalorder %v94, %v271
    %vm673 = vcmp.eq.s32.totalorder %v94, %v275
    %vm674 = vcmp.eq.s32.totalorder %v94, %v279
    %vm675 = vcmp.eq.s32.totalorder %v94, %v283
    %vm676 = vcmp.eq.s32.totalorder %v94, %v287
    %vm677 = vcmp.eq.s32.totalorder %v94, %v291
    %vm678 = vcmp.eq.s32.totalorder %v94, %v295
    %vm679 = vcmp.eq.s32.totalorder %v94, %v302
    %vm680 = vcmp.eq.s32.totalorder %v94, %v306
    %vm681 = vcmp.eq.s32.totalorder %v94, %v310
    %vm682 = vcmp.eq.s32.totalorder %v94, %v314
    %vm683 = vcmp.eq.s32.totalorder %v94, %v318
    %vm684 = vcmp.eq.s32.totalorder %v94, %v322
    %vm685 = vcmp.eq.s32.totalorder %v94, %v326
    %vm686 = vcmp.eq.s32.totalorder %v94, %v330
    %vm687 = vcmp.eq.s32.totalorder %v94, %v334
    %vm688 = vcmp.eq.s32.totalorder %v94, %v338
    %vm689 = vcmp.eq.s32.totalorder %v94, %v342
    %vm690 = vcmp.eq.s32.totalorder %v94, %v346
    %vm691 = vcmp.eq.s32.totalorder %v94, %v350
    %vm692 = vcmp.eq.s32.totalorder %v94, %v354
    %vm693 = vcmp.eq.s32.totalorder %v94, %v358
    %vm694 = vcmp.eq.s32.totalorder %v94, %v362
    %vm695 = vcmp.eq.s32.totalorder %v94, %v369
    %vm696 = vcmp.eq.s32.totalorder %v94, %v373
    %vm697 = vcmp.eq.s32.totalorder %v94, %v377
    %vm698 = vcmp.eq.s32.totalorder %v94, %v381
    %vm699 = vcmp.eq.s32.totalorder %v94, %v385
    %vm700 = vcmp.eq.s32.totalorder %v94, %v389
    %vm701 = vcmp.eq.s32.totalorder %v94, %v393
    %vm702 = vcmp.eq.s32.totalorder %v94, %v397
    %vm703 = vcmp.eq.s32.totalorder %v94, %v401
    %vm704 = vcmp.eq.s32.totalorder %v94, %v405
    %vm705 = vcmp.eq.s32.totalorder %v94, %v409
    %vm706 = vcmp.eq.s32.totalorder %v94, %v413
    %vm707 = vcmp.eq.s32.totalorder %v94, %v417
    %vm708 = vcmp.eq.s32.totalorder %v94, %v421
    %vm709 = vcmp.eq.s32.totalorder %v94, %v425
    %vm710 = vcmp.eq.s32.totalorder %v94, %v429
    %vm711 = vcmp.eq.s32.totalorder %v94, %v436
    %vm712 = vcmp.eq.s32.totalorder %v94, %v440
    %vm713 = vcmp.eq.s32.totalorder %v94, %v444
    %vm714 = vcmp.eq.s32.totalorder %v94, %v448
    %vm715 = vcmp.eq.s32.totalorder %v94, %v452
    %vm716 = vcmp.eq.s32.totalorder %v94, %v456
    %vm717 = vcmp.eq.s32.totalorder %v94, %v460
    %vm718 = vcmp.eq.s32.totalorder %v94, %v464
    %vm719 = vcmp.eq.s32.totalorder %v94, %v468
    %vm720 = vcmp.eq.s32.totalorder %v94, %v472
    %vm721 = vcmp.eq.s32.totalorder %v94, %v476
    %vm722 = vcmp.eq.s32.totalorder %v94, %v480
    %vm723 = vcmp.eq.s32.totalorder %v94, %v484
    %vm724 = vcmp.eq.s32.totalorder %v94, %v488
    %vm725 = vcmp.eq.s32.totalorder %v94, %v492
    %vm726 = vcmp.eq.s32.totalorder %v94, %v496
    %vm727 = vcmp.eq.s32.totalorder %v94, %v503
    %vm728 = vcmp.eq.s32.totalorder %v94, %v507
    %vm729 = vcmp.eq.s32.totalorder %v94, %v511
    %vm730 = vcmp.eq.s32.totalorder %v94, %v515
    %vm731 = vcmp.eq.s32.totalorder %v94, %v519
    %vm732 = vcmp.eq.s32.totalorder %v94, %v523
    %vm733 = vcmp.eq.s32.totalorder %v94, %v527
    %vm734 = vcmp.eq.s32.totalorder %v94, %v531
    %vm735 = vcmp.eq.s32.totalorder %v94, %v535
    %vm736 = vcmp.eq.s32.totalorder %v94, %v539
    %vm737 = vcmp.eq.s32.totalorder %v94, %v543
    %vm738 = vcmp.eq.s32.totalorder %v94, %v547
    %vm739 = vcmp.eq.s32.totalorder %v94, %v551
    %vm740 = vcmp.eq.s32.totalorder %v94, %v555
    %vm741 = vcmp.eq.s32.totalorder %v94, %v559
    %vm742 = vcmp.eq.s32.totalorder %v94, %v563
    %vm743 = vcmp.eq.s32.totalorder %v94, %v570
    %vm744 = vcmp.eq.s32.totalorder %v94, %v574
    %vm745 = vcmp.eq.s32.totalorder %v94, %v578
    %vm746 = vcmp.eq.s32.totalorder %v94, %v582
    %vm747 = vcmp.eq.s32.totalorder %v94, %v586
    %vm748 = vcmp.eq.s32.totalorder %v94, %v590
    %vm749 = vcmp.eq.s32.totalorder %v94, %v594
    %vm750 = vcmp.eq.s32.totalorder %v94, %v598
    %vm751 = vcmp.eq.s32.totalorder %v94, %v602
    %vm752 = vcmp.eq.s32.totalorder %v94, %v606
    %vm753 = vcmp.eq.s32.totalorder %v94, %v610
    %vm754 = vcmp.eq.s32.totalorder %v94, %v614
    %vm755 = vcmp.eq.s32.totalorder %v94, %v618
    %vm756 = vcmp.eq.s32.totalorder %v94, %v622
    %vm757 = vcmp.eq.s32.totalorder %v94, %v626
    %vm758 = vcmp.eq.s32.totalorder %v94, %v630
    %v759 = vlaneseq
    %v760 = vshrl.u32 %v759, 7
    %v761 = vsub.s32 0, %v760
    %v762 = vrot.slane %v92, %v761
    %764 = vbcast.lane.b32.xlu0 %v762, 256
    %v765 = vpop.permute.xlu0 %764
    %s767 = sor.u32 256, 8
    %768 = vbcast.lane.b32.xlu0 %v762, %s767
    %v769 = vpop.permute.xlu0 %768
    %s771 = sor.u32 256, 16
    %772 = vbcast.lane.b32.xlu0 %v762, %s771
    %v773 = vpop.permute.xlu0 %772
    %s775 = sor.u32 256, 24
    %776 = vbcast.lane.b32.xlu0 %v762, %s775
    %v777 = vpop.permute.xlu0 %776
    %s779 = sor.u32 256, 32
    %780 = vbcast.lane.b32.xlu0 %v762, %s779
    %v781 = vpop.permute.xlu0 %780
    %s783 = sor.u32 256, 40
    %784 = vbcast.lane.b32.xlu0 %v762, %s783
    %v785 = vpop.permute.xlu0 %784
    %s787 = sor.u32 256, 48
    %788 = vbcast.lane.b32.xlu0 %v762, %s787
    %v789 = vpop.permute.xlu0 %788
    %s791 = sor.u32 256, 56
    %792 = vbcast.lane.b32.xlu0 %v762, %s791
    %v793 = vpop.permute.xlu0 %792
    %s795 = sor.u32 256, 64
    %796 = vbcast.lane.b32.xlu0 %v762, %s795
    %v797 = vpop.permute.xlu0 %796
    %s799 = sor.u32 256, 72
    %800 = vbcast.lane.b32.xlu0 %v762, %s799
    %v801 = vpop.permute.xlu0 %800
    %s803 = sor.u32 256, 80
    %804 = vbcast.lane.b32.xlu0 %v762, %s803
    %v805 = vpop.permute.xlu0 %804
    %s807 = sor.u32 256, 88
    %808 = vbcast.lane.b32.xlu0 %v762, %s807
    %v809 = vpop.permute.xlu0 %808
    %s811 = sor.u32 256, 96
    %812 = vbcast.lane.b32.xlu0 %v762, %s811
    %v813 = vpop.permute.xlu0 %812
    %s815 = sor.u32 256, 104
    %816 = vbcast.lane.b32.xlu0 %v762, %s815
    %v817 = vpop.permute.xlu0 %816
    %s819 = sor.u32 256, 112
    %820 = vbcast.lane.b32.xlu0 %v762, %s819
    %v821 = vpop.permute.xlu0 %820
    %s823 = sor.u32 256, 120
    %824 = vbcast.lane.b32.xlu0 %v762, %s823
    %v825 = vpop.permute.xlu0 %824
    %v826 = vlaneseq
    %v827 = vshrl.u32 %v826, 7
    %v828 = vsub.s32 1, %v827
    %v829 = vrot.slane %v92, %v828
    %831 = vbcast.lane.b32.xlu0 %v829, 256
    %v832 = vpop.permute.xlu0 %831
    %s834 = sor.u32 256, 8
    %835 = vbcast.lane.b32.xlu0 %v829, %s834
    %v836 = vpop.permute.xlu0 %835
    %s838 = sor.u32 256, 16
    %839 = vbcast.lane.b32.xlu0 %v829, %s838
    %v840 = vpop.permute.xlu0 %839
    %s842 = sor.u32 256, 24
    %843 = vbcast.lane.b32.xlu0 %v829, %s842
    %v844 = vpop.permute.xlu0 %843
    %s846 = sor.u32 256, 32
    %847 = vbcast.lane.b32.xlu0 %v829, %s846
    %v848 = vpop.permute.xlu0 %847
    %s850 = sor.u32 256, 40
    %851 = vbcast.lane.b32.xlu0 %v829, %s850
    %v852 = vpop.permute.xlu0 %851
    %s854 = sor.u32 256, 48
    %855 = vbcast.lane.b32.xlu0 %v829, %s854
    %v856 = vpop.permute.xlu0 %855
    %s858 = sor.u32 256, 56
    %859 = vbcast.lane.b32.xlu0 %v829, %s858
    %v860 = vpop.permute.xlu0 %859
    %s862 = sor.u32 256, 64
    %863 = vbcast.lane.b32.xlu0 %v829, %s862
    %v864 = vpop.permute.xlu0 %863
    %s866 = sor.u32 256, 72
    %867 = vbcast.lane.b32.xlu0 %v829, %s866
    %v868 = vpop.permute.xlu0 %867
    %s870 = sor.u32 256, 80
    %871 = vbcast.lane.b32.xlu0 %v829, %s870
    %v872 = vpop.permute.xlu0 %871
    %s874 = sor.u32 256, 88
    %875 = vbcast.lane.b32.xlu0 %v829, %s874
    %v876 = vpop.permute.xlu0 %875
    %s878 = sor.u32 256, 96
    %879 = vbcast.lane.b32.xlu0 %v829, %s878
    %v880 = vpop.permute.xlu0 %879
    %s882 = sor.u32 256, 104
    %883 = vbcast.lane.b32.xlu0 %v829, %s882
    %v884 = vpop.permute.xlu0 %883
    %s886 = sor.u32 256, 112
    %887 = vbcast.lane.b32.xlu0 %v829, %s886
    %v888 = vpop.permute.xlu0 %887
    %s890 = sor.u32 256, 120
    %891 = vbcast.lane.b32.xlu0 %v829, %s890
    %v892 = vpop.permute.xlu0 %891
    %v893 = vlaneseq
    %v894 = vshrl.u32 %v893, 7
    %v895 = vsub.s32 2, %v894
    %v896 = vrot.slane %v92, %v895
    %898 = vbcast.lane.b32.xlu0 %v896, 256
    %v899 = vpop.permute.xlu0 %898
    %s901 = sor.u32 256, 8
    %902 = vbcast.lane.b32.xlu0 %v896, %s901
    %v903 = vpop.permute.xlu0 %902
    %s905 = sor.u32 256, 16
    %906 = vbcast.lane.b32.xlu0 %v896, %s905
    %v907 = vpop.permute.xlu0 %906
    %s909 = sor.u32 256, 24
    %910 = vbcast.lane.b32.xlu0 %v896, %s909
    %v911 = vpop.permute.xlu0 %910
    %s913 = sor.u32 256, 32
    %914 = vbcast.lane.b32.xlu0 %v896, %s913
    %v915 = vpop.permute.xlu0 %914
    %s917 = sor.u32 256, 40
    %918 = vbcast.lane.b32.xlu0 %v896, %s917
    %v919 = vpop.permute.xlu0 %918
    %s921 = sor.u32 256, 48
    %922 = vbcast.lane.b32.xlu0 %v896, %s921
    %v923 = vpop.permute.xlu0 %922
    %s925 = sor.u32 256, 56
    %926 = vbcast.lane.b32.xlu0 %v896, %s925
    %v927 = vpop.permute.xlu0 %926
    %s929 = sor.u32 256, 64
    %930 = vbcast.lane.b32.xlu0 %v896, %s929
    %v931 = vpop.permute.xlu0 %930
    %s933 = sor.u32 256, 72
    %934 = vbcast.lane.b32.xlu0 %v896, %s933
    %v935 = vpop.permute.xlu0 %934
    %s937 = sor.u32 256, 80
    %938 = vbcast.lane.b32.xlu0 %v896, %s937
    %v939 = vpop.permute.xlu0 %938
    %s941 = sor.u32 256, 88
    %942 = vbcast.lane.b32.xlu0 %v896, %s941
    %v943 = vpop.permute.xlu0 %942
    %s945 = sor.u32 256, 96
    %946 = vbcast.lane.b32.xlu0 %v896, %s945
    %v947 = vpop.permute.xlu0 %946
    %s949 = sor.u32 256, 104
    %950 = vbcast.lane.b32.xlu0 %v896, %s949
    %v951 = vpop.permute.xlu0 %950
    %s953 = sor.u32 256, 112
    %954 = vbcast.lane.b32.xlu0 %v896, %s953
    %v955 = vpop.permute.xlu0 %954
    %s957 = sor.u32 256, 120
    %958 = vbcast.lane.b32.xlu0 %v896, %s957
    %v959 = vpop.permute.xlu0 %958
    %v960 = vlaneseq
    %v961 = vshrl.u32 %v960, 7
    %v962 = vsub.s32 3, %v961
    %v963 = vrot.slane %v92, %v962
    %965 = vbcast.lane.b32.xlu0 %v963, 256
    %v966 = vpop.permute.xlu0 %965
    %s968 = sor.u32 256, 8
    %969 = vbcast.lane.b32.xlu0 %v963, %s968
    %v970 = vpop.permute.xlu0 %969
    %s972 = sor.u32 256, 16
    %973 = vbcast.lane.b32.xlu0 %v963, %s972
    %v974 = vpop.permute.xlu0 %973
    %s976 = sor.u32 256, 24
    %977 = vbcast.lane.b32.xlu0 %v963, %s976
    %v978 = vpop.permute.xlu0 %977
    %s980 = sor.u32 256, 32
    %981 = vbcast.lane.b32.xlu0 %v963, %s980
    %v982 = vpop.permute.xlu0 %981
    %s984 = sor.u32 256, 40
    %985 = vbcast.lane.b32.xlu0 %v963, %s984
    %v986 = vpop.permute.xlu0 %985
    %s988 = sor.u32 256, 48
    %989 = vbcast.lane.b32.xlu0 %v963, %s988
    %v990 = vpop.permute.xlu0 %989
    %s992 = sor.u32 256, 56
    %993 = vbcast.lane.b32.xlu0 %v963, %s992
    %v994 = vpop.permute.xlu0 %993
    %s996 = sor.u32 256, 64
    %997 = vbcast.lane.b32.xlu0 %v963, %s996
    %v998 = vpop.permute.xlu0 %997
    %s1000 = sor.u32 256, 72
    %1001 = vbcast.lane.b32.xlu0 %v963, %s1000
    %v1002 = vpop.permute.xlu0 %1001
    %s1004 = sor.u32 256, 80
    %1005 = vbcast.lane.b32.xlu0 %v963, %s1004
    %v1006 = vpop.permute.xlu0 %1005
    %s1008 = sor.u32 256, 88
    %1009 = vbcast.lane.b32.xlu0 %v963, %s1008
    %v1010 = vpop.permute.xlu0 %1009
    %s1012 = sor.u32 256, 96
    %1013 = vbcast.lane.b32.xlu0 %v963, %s1012
    %v1014 = vpop.permute.xlu0 %1013
    %s1016 = sor.u32 256, 104
    %1017 = vbcast.lane.b32.xlu0 %v963, %s1016
    %v1018 = vpop.permute.xlu0 %1017
    %s1020 = sor.u32 256, 112
    %1021 = vbcast.lane.b32.xlu0 %v963, %s1020
    %v1022 = vpop.permute.xlu0 %1021
    %s1024 = sor.u32 256, 120
    %1025 = vbcast.lane.b32.xlu0 %v963, %s1024
    %v1026 = vpop.permute.xlu0 %1025
    %v1027 = vlaneseq
    %v1028 = vshrl.u32 %v1027, 7
    %v1029 = vsub.s32 4, %v1028
    %v1030 = vrot.slane %v92, %v1029
    %1032 = vbcast.lane.b32.xlu0 %v1030, 256
    %v1033 = vpop.permute.xlu0 %1032
    %s1035 = sor.u32 256, 8
    %1036 = vbcast.lane.b32.xlu0 %v1030, %s1035
    %v1037 = vpop.permute.xlu0 %1036
    %s1039 = sor.u32 256, 16
    %1040 = vbcast.lane.b32.xlu0 %v1030, %s1039
    %v1041 = vpop.permute.xlu0 %1040
    %s1043 = sor.u32 256, 24
    %1044 = vbcast.lane.b32.xlu0 %v1030, %s1043
    %v1045 = vpop.permute.xlu0 %1044
    %s1047 = sor.u32 256, 32
    %1048 = vbcast.lane.b32.xlu0 %v1030, %s1047
    %v1049 = vpop.permute.xlu0 %1048
    %s1051 = sor.u32 256, 40
    %1052 = vbcast.lane.b32.xlu0 %v1030, %s1051
    %v1053 = vpop.permute.xlu0 %1052
    %s1055 = sor.u32 256, 48
    %1056 = vbcast.lane.b32.xlu0 %v1030, %s1055
    %v1057 = vpop.permute.xlu0 %1056
    %s1059 = sor.u32 256, 56
    %1060 = vbcast.lane.b32.xlu0 %v1030, %s1059
    %v1061 = vpop.permute.xlu0 %1060
    %s1063 = sor.u32 256, 64
    %1064 = vbcast.lane.b32.xlu0 %v1030, %s1063
    %v1065 = vpop.permute.xlu0 %1064
    %s1067 = sor.u32 256, 72
    %1068 = vbcast.lane.b32.xlu0 %v1030, %s1067
    %v1069 = vpop.permute.xlu0 %1068
    %s1071 = sor.u32 256, 80
    %1072 = vbcast.lane.b32.xlu0 %v1030, %s1071
    %v1073 = vpop.permute.xlu0 %1072
    %s1075 = sor.u32 256, 88
    %1076 = vbcast.lane.b32.xlu0 %v1030, %s1075
    %v1077 = vpop.permute.xlu0 %1076
    %s1079 = sor.u32 256, 96
    %1080 = vbcast.lane.b32.xlu0 %v1030, %s1079
    %v1081 = vpop.permute.xlu0 %1080
    %s1083 = sor.u32 256, 104
    %1084 = vbcast.lane.b32.xlu0 %v1030, %s1083
    %v1085 = vpop.permute.xlu0 %1084
    %s1087 = sor.u32 256, 112
    %1088 = vbcast.lane.b32.xlu0 %v1030, %s1087
    %v1089 = vpop.permute.xlu0 %1088
    %s1091 = sor.u32 256, 120
    %1092 = vbcast.lane.b32.xlu0 %v1030, %s1091
    %v1093 = vpop.permute.xlu0 %1092
    %v1094 = vlaneseq
    %v1095 = vshrl.u32 %v1094, 7
    %v1096 = vsub.s32 5, %v1095
    %v1097 = vrot.slane %v92, %v1096
    %1099 = vbcast.lane.b32.xlu0 %v1097, 256
    %v1100 = vpop.permute.xlu0 %1099
    %s1102 = sor.u32 256, 8
    %1103 = vbcast.lane.b32.xlu0 %v1097, %s1102
    %v1104 = vpop.permute.xlu0 %1103
    %s1106 = sor.u32 256, 16
    %1107 = vbcast.lane.b32.xlu0 %v1097, %s1106
    %v1108 = vpop.permute.xlu0 %1107
    %s1110 = sor.u32 256, 24
    %1111 = vbcast.lane.b32.xlu0 %v1097, %s1110
    %v1112 = vpop.permute.xlu0 %1111
    %s1114 = sor.u32 256, 32
    %1115 = vbcast.lane.b32.xlu0 %v1097, %s1114
    %v1116 = vpop.permute.xlu0 %1115
    %s1118 = sor.u32 256, 40
    %1119 = vbcast.lane.b32.xlu0 %v1097, %s1118
    %v1120 = vpop.permute.xlu0 %1119
    %s1122 = sor.u32 256, 48
    %1123 = vbcast.lane.b32.xlu0 %v1097, %s1122
    %v1124 = vpop.permute.xlu0 %1123
    %s1126 = sor.u32 256, 56
    %1127 = vbcast.lane.b32.xlu0 %v1097, %s1126
    %v1128 = vpop.permute.xlu0 %1127
    %s1130 = sor.u32 256, 64
    %1131 = vbcast.lane.b32.xlu0 %v1097, %s1130
    %v1132 = vpop.permute.xlu0 %1131
    %s1134 = sor.u32 256, 72
    %1135 = vbcast.lane.b32.xlu0 %v1097, %s1134
    %v1136 = vpop.permute.xlu0 %1135
    %s1138 = sor.u32 256, 80
    %1139 = vbcast.lane.b32.xlu0 %v1097, %s1138
    %v1140 = vpop.permute.xlu0 %1139
    %s1142 = sor.u32 256, 88
    %1143 = vbcast.lane.b32.xlu0 %v1097, %s1142
    %v1144 = vpop.permute.xlu0 %1143
    %s1146 = sor.u32 256, 96
    %1147 = vbcast.lane.b32.xlu0 %v1097, %s1146
    %v1148 = vpop.permute.xlu0 %1147
    %s1150 = sor.u32 256, 104
    %1151 = vbcast.lane.b32.xlu0 %v1097, %s1150
    %v1152 = vpop.permute.xlu0 %1151
    %s1154 = sor.u32 256, 112
    %1155 = vbcast.lane.b32.xlu0 %v1097, %s1154
    %v1156 = vpop.permute.xlu0 %1155
    %s1158 = sor.u32 256, 120
    %1159 = vbcast.lane.b32.xlu0 %v1097, %s1158
    %v1160 = vpop.permute.xlu0 %1159
    %v1161 = vlaneseq
    %v1162 = vshrl.u32 %v1161, 7
    %v1163 = vsub.s32 6, %v1162
    %v1164 = vrot.slane %v92, %v1163
    %1166 = vbcast.lane.b32.xlu0 %v1164, 256
    %v1167 = vpop.permute.xlu0 %1166
    %s1169 = sor.u32 256, 8
    %1170 = vbcast.lane.b32.xlu0 %v1164, %s1169
    %v1171 = vpop.permute.xlu0 %1170
    %s1173 = sor.u32 256, 16
    %1174 = vbcast.lane.b32.xlu0 %v1164, %s1173
    %v1175 = vpop.permute.xlu0 %1174
    %s1177 = sor.u32 256, 24
    %1178 = vbcast.lane.b32.xlu0 %v1164, %s1177
    %v1179 = vpop.permute.xlu0 %1178
    %s1181 = sor.u32 256, 32
    %1182 = vbcast.lane.b32.xlu0 %v1164, %s1181
    %v1183 = vpop.permute.xlu0 %1182
    %s1185 = sor.u32 256, 40
    %1186 = vbcast.lane.b32.xlu0 %v1164, %s1185
    %v1187 = vpop.permute.xlu0 %1186
    %s1189 = sor.u32 256, 48
    %1190 = vbcast.lane.b32.xlu0 %v1164, %s1189
    %v1191 = vpop.permute.xlu0 %1190
    %s1193 = sor.u32 256, 56
    %1194 = vbcast.lane.b32.xlu0 %v1164, %s1193
    %v1195 = vpop.permute.xlu0 %1194
    %s1197 = sor.u32 256, 64
    %1198 = vbcast.lane.b32.xlu0 %v1164, %s1197
    %v1199 = vpop.permute.xlu0 %1198
    %s1201 = sor.u32 256, 72
    %1202 = vbcast.lane.b32.xlu0 %v1164, %s1201
    %v1203 = vpop.permute.xlu0 %1202
    %s1205 = sor.u32 256, 80
    %1206 = vbcast.lane.b32.xlu0 %v1164, %s1205
    %v1207 = vpop.permute.xlu0 %1206
    %s1209 = sor.u32 256, 88
    %1210 = vbcast.lane.b32.xlu0 %v1164, %s1209
    %v1211 = vpop.permute.xlu0 %1210
    %s1213 = sor.u32 256, 96
    %1214 = vbcast.lane.b32.xlu0 %v1164, %s1213
    %v1215 = vpop.permute.xlu0 %1214
    %s1217 = sor.u32 256, 104
    %1218 = vbcast.lane.b32.xlu0 %v1164, %s1217
    %v1219 = vpop.permute.xlu0 %1218
    %s1221 = sor.u32 256, 112
    %1222 = vbcast.lane.b32.xlu0 %v1164, %s1221
    %v1223 = vpop.permute.xlu0 %1222
    %s1225 = sor.u32 256, 120
    %1226 = vbcast.lane.b32.xlu0 %v1164, %s1225
    %v1227 = vpop.permute.xlu0 %1226
    %v1228 = vlaneseq
    %v1229 = vshrl.u32 %v1228, 7
    %v1230 = vsub.s32 7, %v1229
    %v1231 = vrot.slane %v92, %v1230
    %1233 = vbcast.lane.b32.xlu0 %v1231, 256
    %v1234 = vpop.permute.xlu0 %1233
    %s1236 = sor.u32 256, 8
    %1237 = vbcast.lane.b32.xlu0 %v1231, %s1236
    %v1238 = vpop.permute.xlu0 %1237
    %s1240 = sor.u32 256, 16
    %1241 = vbcast.lane.b32.xlu0 %v1231, %s1240
    %v1242 = vpop.permute.xlu0 %1241
    %s1244 = sor.u32 256, 24
    %1245 = vbcast.lane.b32.xlu0 %v1231, %s1244
    %v1246 = vpop.permute.xlu0 %1245
    %s1248 = sor.u32 256, 32
    %1249 = vbcast.lane.b32.xlu0 %v1231, %s1248
    %v1250 = vpop.permute.xlu0 %1249
    %s1252 = sor.u32 256, 40
    %1253 = vbcast.lane.b32.xlu0 %v1231, %s1252
    %v1254 = vpop.permute.xlu0 %1253
    %s1256 = sor.u32 256, 48
    %1257 = vbcast.lane.b32.xlu0 %v1231, %s1256
    %v1258 = vpop.permute.xlu0 %1257
    %s1260 = sor.u32 256, 56
    %1261 = vbcast.lane.b32.xlu0 %v1231, %s1260
    %v1262 = vpop.permute.xlu0 %1261
    %s1264 = sor.u32 256, 64
    %1265 = vbcast.lane.b32.xlu0 %v1231, %s1264
    %v1266 = vpop.permute.xlu0 %1265
    %s1268 = sor.u32 256, 72
    %1269 = vbcast.lane.b32.xlu0 %v1231, %s1268
    %v1270 = vpop.permute.xlu0 %1269
    %s1272 = sor.u32 256, 80
    %1273 = vbcast.lane.b32.xlu0 %v1231, %s1272
    %v1274 = vpop.permute.xlu0 %1273
    %s1276 = sor.u32 256, 88
    %1277 = vbcast.lane.b32.xlu0 %v1231, %s1276
    %v1278 = vpop.permute.xlu0 %1277
    %s1280 = sor.u32 256, 96
    %1281 = vbcast.lane.b32.xlu0 %v1231, %s1280
    %v1282 = vpop.permute.xlu0 %1281
    %s1284 = sor.u32 256, 104
    %1285 = vbcast.lane.b32.xlu0 %v1231, %s1284
    %v1286 = vpop.permute.xlu0 %1285
    %s1288 = sor.u32 256, 112
    %1289 = vbcast.lane.b32.xlu0 %v1231, %s1288
    %v1290 = vpop.permute.xlu0 %1289
    %s1292 = sor.u32 256, 120
    %1293 = vbcast.lane.b32.xlu0 %v1231, %s1292
    %v1294 = vpop.permute.xlu0 %1293
    %v1295 = vsel %vm631, %v765, 0.0
    %v1296 = vsel %vm632, %v769, 0.0
    %v1297 = vsel %vm633, %v773, 0.0
    %v1298 = vsel %vm634, %v777, 0.0
    %v1299 = vsel %vm635, %v781, 0.0
    %v1300 = vsel %vm636, %v785, 0.0
    %v1301 = vsel %vm637, %v789, 0.0
    %v1302 = vsel %vm638, %v793, 0.0
    %v1303 = vsel %vm639, %v797, 0.0
    %v1304 = vsel %vm640, %v801, 0.0
    %v1305 = vsel %vm641, %v805, 0.0
    %v1306 = vsel %vm642, %v809, 0.0
    %v1307 = vsel %vm643, %v813, 0.0
    %v1308 = vsel %vm644, %v817, 0.0
    %v1309 = vsel %vm645, %v821, 0.0
    %v1310 = vsel %vm646, %v825, 0.0
    %v1311 = vsel %vm647, %v832, 0.0
    %v1312 = vsel %vm648, %v836, 0.0
    %v1313 = vsel %vm649, %v840, 0.0
    %v1314 = vsel %vm650, %v844, 0.0
    %v1315 = vsel %vm651, %v848, 0.0
    %v1316 = vsel %vm652, %v852, 0.0
    %v1317 = vsel %vm653, %v856, 0.0
    %v1318 = vsel %vm654, %v860, 0.0
    %v1319 = vsel %vm655, %v864, 0.0
    %v1320 = vsel %vm656, %v868, 0.0
    %v1321 = vsel %vm657, %v872, 0.0
    %v1322 = vsel %vm658, %v876, 0.0
    %v1323 = vsel %vm659, %v880, 0.0
    %v1324 = vsel %vm660, %v884, 0.0
    %v1325 = vsel %vm661, %v888, 0.0
    %v1326 = vsel %vm662, %v892, 0.0
    %v1327 = vsel %vm663, %v899, 0.0
    %v1328 = vsel %vm664, %v903, 0.0
    %v1329 = vsel %vm665, %v907, 0.0
    %v1330 = vsel %vm666, %v911, 0.0
    %v1331 = vsel %vm667, %v915, 0.0
    %v1332 = vsel %vm668, %v919, 0.0
    %v1333 = vsel %vm669, %v923, 0.0
    %v1334 = vsel %vm670, %v927, 0.0
    %v1335 = vsel %vm671, %v931, 0.0
    %v1336 = vsel %vm672, %v935, 0.0
    %v1337 = vsel %vm673, %v939, 0.0
    %v1338 = vsel %vm674, %v943, 0.0
    %v1339 = vsel %vm675, %v947, 0.0
    %v1340 = vsel %vm676, %v951, 0.0
    %v1341 = vsel %vm677, %v955, 0.0
    %v1342 = vsel %vm678, %v959, 0.0
    %v1343 = vsel %vm679, %v966, 0.0
    %v1344 = vsel %vm680, %v970, 0.0
    %v1345 = vsel %vm681, %v974, 0.0
    %v1346 = vsel %vm682, %v978, 0.0
    %v1347 = vsel %vm683, %v982, 0.0
    %v1348 = vsel %vm684, %v986, 0.0
    %v1349 = vsel %vm685, %v990, 0.0
    %v1350 = vsel %vm686, %v994, 0.0
    %v1351 = vsel %vm687, %v998, 0.0
    %v1352 = vsel %vm688, %v1002, 0.0
    %v1353 = vsel %vm689, %v1006, 0.0
    %v1354 = vsel %vm690, %v1010, 0.0
    %v1355 = vsel %vm691, %v1014, 0.0
    %v1356 = vsel %vm692, %v1018, 0.0
    %v1357 = vsel %vm693, %v1022, 0.0
    %v1358 = vsel %vm694, %v1026, 0.0
    %v1359 = vsel %vm695, %v1033, 0.0
    %v1360 = vsel %vm696, %v1037, 0.0
    %v1361 = vsel %vm697, %v1041, 0.0
    %v1362 = vsel %vm698, %v1045, 0.0
    %v1363 = vsel %vm699, %v1049, 0.0
    %v1364 = vsel %vm700, %v1053, 0.0
    %v1365 = vsel %vm701, %v1057, 0.0
    %v1366 = vsel %vm702, %v1061, 0.0
    %v1367 = vsel %vm703, %v1065, 0.0
    %v1368 = vsel %vm704, %v1069, 0.0
    %v1369 = vsel %vm705, %v1073, 0.0
    %v1370 = vsel %vm706, %v1077, 0.0
    %v1371 = vsel %vm707, %v1081, 0.0
    %v1372 = vsel %vm708, %v1085, 0.0
    %v1373 = vsel %vm709, %v1089, 0.0
    %v1374 = vsel %vm710, %v1093, 0.0
    %v1375 = vsel %vm711, %v1100, 0.0
    %v1376 = vsel %vm712, %v1104, 0.0
    %v1377 = vsel %vm713, %v1108, 0.0
    %v1378 = vsel %vm714, %v1112, 0.0
    %v1379 = vsel %vm715, %v1116, 0.0
    %v1380 = vsel %vm716, %v1120, 0.0
    %v1381 = vsel %vm717, %v1124, 0.0
    %v1382 = vsel %vm718, %v1128, 0.0
    %v1383 = vsel %vm719, %v1132, 0.0
    %v1384 = vsel %vm720, %v1136, 0.0
    %v1385 = vsel %vm721, %v1140, 0.0
    %v1386 = vsel %vm722, %v1144, 0.0
    %v1387 = vsel %vm723, %v1148, 0.0
    %v1388 = vsel %vm724, %v1152, 0.0
    %v1389 = vsel %vm725, %v1156, 0.0
    %v1390 = vsel %vm726, %v1160, 0.0
    %v1391 = vsel %vm727, %v1167, 0.0
    %v1392 = vsel %vm728, %v1171, 0.0
    %v1393 = vsel %vm729, %v1175, 0.0
    %v1394 = vsel %vm730, %v1179, 0.0
    %v1395 = vsel %vm731, %v1183, 0.0
    %v1396 = vsel %vm732, %v1187, 0.0
    %v1397 = vsel %vm733, %v1191, 0.0
    %v1398 = vsel %vm734, %v1195, 0.0
    %v1399 = vsel %vm735, %v1199, 0.0
    %v1400 = vsel %vm736, %v1203, 0.0
    %v1401 = vsel %vm737, %v1207, 0.0
    %v1402 = vsel %vm738, %v1211, 0.0
    %v1403 = vsel %vm739, %v1215, 0.0
    %v1404 = vsel %vm740, %v1219, 0.0
    %v1405 = vsel %vm741, %v1223, 0.0
    %v1406 = vsel %vm742, %v1227, 0.0
    %v1407 = vsel %vm743, %v1234, 0.0
    %v1408 = vsel %vm744, %v1238, 0.0
    %v1409 = vsel %vm745, %v1242, 0.0
    %v1410 = vsel %vm746, %v1246, 0.0
    %v1411 = vsel %vm747, %v1250, 0.0
    %v1412 = vsel %vm748, %v1254, 0.0
    %v1413 = vsel %vm749, %v1258, 0.0
    %v1414 = vsel %vm750, %v1262, 0.0
    %v1415 = vsel %vm751, %v1266, 0.0
    %v1416 = vsel %vm752, %v1270, 0.0
    %v1417 = vsel %vm753, %v1274, 0.0
    %v1418 = vsel %vm754, %v1278, 0.0
    %v1419 = vsel %vm755, %v1282, 0.0
    %v1420 = vsel %vm756, %v1286, 0.0
    %v1421 = vsel %vm757, %v1290, 0.0
    %v1422 = vsel %vm758, %v1294, 0.0
    %v1423 = vadd.f32 %v1295, %v1296
    %v1424 = vadd.f32 %v1423, %v1297
    %v1425 = vadd.f32 %v1424, %v1298
    %v1426 = vadd.f32 %v1425, %v1299
    %v1427 = vadd.f32 %v1426, %v1300
    %v1428 = vadd.f32 %v1427, %v1301
    %v1429 = vadd.f32 %v1428, %v1302
    %v1430 = vadd.f32 %v1429, %v1303
    %v1431 = vadd.f32 %v1430, %v1304
    %v1432 = vadd.f32 %v1431, %v1305
    %v1433 = vadd.f32 %v1432, %v1306
    %v1434 = vadd.f32 %v1433, %v1307
    %v1435 = vadd.f32 %v1434, %v1308
    %v1436 = vadd.f32 %v1435, %v1309
    %v1437 = vadd.f32 %v1436, %v1310
    %v1438 = vrot.slane %v1437, 4
    %v1439 = vadd.f32 %v1437, %v1438
    %v1440 = vrot.slane %v1439, 2
    %v1441 = vadd.f32 %v1439, %v1440
    %v1442 = vrot.slane %v1441, 1
    %v1443 = vadd.f32 %v1441, %v1442
    %v1444 = vadd.f32 %v1311, %v1312
    %v1445 = vadd.f32 %v1444, %v1313
    %v1446 = vadd.f32 %v1445, %v1314
    %v1447 = vadd.f32 %v1446, %v1315
    %v1448 = vadd.f32 %v1447, %v1316
    %v1449 = vadd.f32 %v1448, %v1317
    %v1450 = vadd.f32 %v1449, %v1318
    %v1451 = vadd.f32 %v1450, %v1319
    %v1452 = vadd.f32 %v1451, %v1320
    %v1453 = vadd.f32 %v1452, %v1321
    %v1454 = vadd.f32 %v1453, %v1322
    %v1455 = vadd.f32 %v1454, %v1323
    %v1456 = vadd.f32 %v1455, %v1324
    %v1457 = vadd.f32 %v1456, %v1325
    %v1458 = vadd.f32 %v1457, %v1326
    %v1459 = vrot.slane %v1458, 4
    %v1460 = vadd.f32 %v1458, %v1459
    %v1461 = vrot.slane %v1460, 2
    %v1462 = vadd.f32 %v1460, %v1461
    %v1463 = vrot.slane %v1462, 1
    %v1464 = vadd.f32 %v1462, %v1463
    %v1465 = vadd.f32 %v1327, %v1328
    %v1466 = vadd.f32 %v1465, %v1329
    %v1467 = vadd.f32 %v1466, %v1330
    %v1468 = vadd.f32 %v1467, %v1331
    %v1469 = vadd.f32 %v1468, %v1332
    %v1470 = vadd.f32 %v1469, %v1333
    %v1471 = vadd.f32 %v1470, %v1334
    %v1472 = vadd.f32 %v1471, %v1335
    %v1473 = vadd.f32 %v1472, %v1336
    %v1474 = vadd.f32 %v1473, %v1337
    %v1475 = vadd.f32 %v1474, %v1338
    %v1476 = vadd.f32 %v1475, %v1339
    %v1477 = vadd.f32 %v1476, %v1340
    %v1478 = vadd.f32 %v1477, %v1341
    %v1479 = vadd.f32 %v1478, %v1342
    %v1480 = vrot.slane %v1479, 4
    %v1481 = vadd.f32 %v1479, %v1480
    %v1482 = vrot.slane %v1481, 2
    %v1483 = vadd.f32 %v1481, %v1482
    %v1484 = vrot.slane %v1483, 1
    %v1485 = vadd.f32 %v1483, %v1484
    %v1486 = vadd.f32 %v1343, %v1344
    %v1487 = vadd.f32 %v1486, %v1345
    %v1488 = vadd.f32 %v1487, %v1346
    %v1489 = vadd.f32 %v1488, %v1347
    %v1490 = vadd.f32 %v1489, %v1348
    %v1491 = vadd.f32 %v1490, %v1349
    %v1492 = vadd.f32 %v1491, %v1350
    %v1493 = vadd.f32 %v1492, %v1351
    %v1494 = vadd.f32 %v1493, %v1352
    %v1495 = vadd.f32 %v1494, %v1353
    %v1496 = vadd.f32 %v1495, %v1354
    %v1497 = vadd.f32 %v1496, %v1355
    %v1498 = vadd.f32 %v1497, %v1356
    %v1499 = vadd.f32 %v1498, %v1357
    %v1500 = vadd.f32 %v1499, %v1358
    %v1501 = vrot.slane %v1500, 4
    %v1502 = vadd.f32 %v1500, %v1501
    %v1503 = vrot.slane %v1502, 2
    %v1504 = vadd.f32 %v1502, %v1503
    %v1505 = vrot.slane %v1504, 1
    %v1506 = vadd.f32 %v1504, %v1505
    %v1507 = vadd.f32 %v1359, %v1360
    %v1508 = vadd.f32 %v1507, %v1361
    %v1509 = vadd.f32 %v1508, %v1362
    %v1510 = vadd.f32 %v1509, %v1363
    %v1511 = vadd.f32 %v1510, %v1364
    %v1512 = vadd.f32 %v1511, %v1365
    %v1513 = vadd.f32 %v1512, %v1366
    %v1514 = vadd.f32 %v1513, %v1367
    %v1515 = vadd.f32 %v1514, %v1368
    %v1516 = vadd.f32 %v1515, %v1369
    %v1517 = vadd.f32 %v1516, %v1370
    %v1518 = vadd.f32 %v1517, %v1371
    %v1519 = vadd.f32 %v1518, %v1372
    %v1520 = vadd.f32 %v1519, %v1373
    %v1521 = vadd.f32 %v1520, %v1374
    %v1522 = vrot.slane %v1521, 4
    %v1523 = vadd.f32 %v1521, %v1522
    %v1524 = vrot.slane %v1523, 2
    %v1525 = vadd.f32 %v1523, %v1524
    %v1526 = vrot.slane %v1525, 1
    %v1527 = vadd.f32 %v1525, %v1526
    %v1528 = vadd.f32 %v1375, %v1376
    %v1529 = vadd.f32 %v1528, %v1377
    %v1530 = vadd.f32 %v1529, %v1378
    %v1531 = vadd.f32 %v1530, %v1379
    %v1532 = vadd.f32 %v1531, %v1380
    %v1533 = vadd.f32 %v1532, %v1381
    %v1534 = vadd.f32 %v1533, %v1382
    %v1535 = vadd.f32 %v1534, %v1383
    %v1536 = vadd.f32 %v1535, %v1384
    %v1537 = vadd.f32 %v1536, %v1385
    %v1538 = vadd.f32 %v1537, %v1386
    %v1539 = vadd.f32 %v1538, %v1387
    %v1540 = vadd.f32 %v1539, %v1388
    %v1541 = vadd.f32 %v1540, %v1389
    %v1542 = vadd.f32 %v1541, %v1390
    %v1543 = vrot.slane %v1542, 4
    %v1544 = vadd.f32 %v1542, %v1543
    %v1545 = vrot.slane %v1544, 2
    %v1546 = vadd.f32 %v1544, %v1545
    %v1547 = vrot.slane %v1546, 1
    %v1548 = vadd.f32 %v1546, %v1547
    %v1549 = vadd.f32 %v1391, %v1392
    %v1550 = vadd.f32 %v1549, %v1393
    %v1551 = vadd.f32 %v1550, %v1394
    %v1552 = vadd.f32 %v1551, %v1395
    %v1553 = vadd.f32 %v1552, %v1396
    %v1554 = vadd.f32 %v1553, %v1397
    %v1555 = vadd.f32 %v1554, %v1398
    %v1556 = vadd.f32 %v1555, %v1399
    %v1557 = vadd.f32 %v1556, %v1400
    %v1558 = vadd.f32 %v1557, %v1401
    %v1559 = vadd.f32 %v1558, %v1402
    %v1560 = vadd.f32 %v1559, %v1403
    %v1561 = vadd.f32 %v1560, %v1404
    %v1562 = vadd.f32 %v1561, %v1405
    %v1563 = vadd.f32 %v1562, %v1406
    %v1564 = vrot.slane %v1563, 4
    %v1565 = vadd.f32 %v1563, %v1564
    %v1566 = vrot.slane %v1565, 2
    %v1567 = vadd.f32 %v1565, %v1566
    %v1568 = vrot.slane %v1567, 1
    %v1569 = vadd.f32 %v1567, %v1568
    %v1570 = vadd.f32 %v1407, %v1408
    %v1571 = vadd.f32 %v1570, %v1409
    %v1572 = vadd.f32 %v1571, %v1410
    %v1573 = vadd.f32 %v1572, %v1411
    %v1574 = vadd.f32 %v1573, %v1412
    %v1575 = vadd.f32 %v1574, %v1413
    %v1576 = vadd.f32 %v1575, %v1414
    %v1577 = vadd.f32 %v1576, %v1415
    %v1578 = vadd.f32 %v1577, %v1416
    %v1579 = vadd.f32 %v1578, %v1417
    %v1580 = vadd.f32 %v1579, %v1418
    %v1581 = vadd.f32 %v1580, %v1419
    %v1582 = vadd.f32 %v1581, %v1420
    %v1583 = vadd.f32 %v1582, %v1421
    %v1584 = vadd.f32 %v1583, %v1422
    %v1585 = vrot.slane %v1584, 4
    %v1586 = vadd.f32 %v1584, %v1585
    %v1587 = vrot.slane %v1586, 2
    %v1588 = vadd.f32 %v1586, %v1587
    %v1589 = vrot.slane %v1588, 1
    %v1590 = vadd.f32 %v1588, %v1589
    %v1591 = vld [vmem:[#allocation7] sm:$0xff]
    %v1592 = vld [vmem:[#allocation7 + $0x8] sm:$0xff]
    %v1593 = vld [vmem:[#allocation7 + $0x10] sm:$0xff]
    %v1594 = vld [vmem:[#allocation7 + $0x18] sm:$0xff]
    %v1595 = vld [vmem:[#allocation7 + $0x20] sm:$0xff]
    %v1596 = vld [vmem:[#allocation7 + $0x28] sm:$0xff]
    %v1597 = vld [vmem:[#allocation7 + $0x30] sm:$0xff]
    %v1598 = vld [vmem:[#allocation7 + $0x38] sm:$0xff]
    %v1599 = vld [vmem:[#allocation7 + $0x40] sm:$0xff]
    %v1600 = vld [vmem:[#allocation7 + $0x48] sm:$0xff]
    %v1601 = vld [vmem:[#allocation7 + $0x50] sm:$0xff]
    %v1602 = vld [vmem:[#allocation7 + $0x58] sm:$0xff]
    %v1603 = vld [vmem:[#allocation7 + $0x60] sm:$0xff]
    %v1604 = vld [vmem:[#allocation7 + $0x68] sm:$0xff]
    %v1605 = vld [vmem:[#allocation7 + $0x70] sm:$0xff]
    %v1606 = vld [vmem:[#allocation7 + $0x78] sm:$0xff]
    %vm1615 = vcmask 1041409
    %v1616 = vsel %vm1615, %v1464, %v1443
    %vm1617 = vcmask 1042434
    %v1618 = vsel %vm1617, %v1485, %v1616
    %vm1619 = vcmask 1043459
    %v1620 = vsel %vm1619, %v1506, %v1618
    %vm1621 = vcmask 1044484
    %v1622 = vsel %vm1621, %v1527, %v1620
    %vm1623 = vcmask 1045509
    %v1624 = vsel %vm1623, %v1548, %v1622
    %vm1625 = vcmask 1046534
    %v1626 = vsel %vm1625, %v1569, %v1624
    %vm1627 = vcmask 1047559
    %v1628 = vsel %vm1627, %v1590, %v1626
    %1630 = vmatprep.subr.mxu0 0.0
    %1631 = vmatpush1.msra.mxu0 %v1606
    %1632 = vmatprep.subr.mxu0 0.0
    %1633 = vmatpush1.msra.mxu0 %v1605
    %1634 = vmatprep.subr.mxu0 0.0
    %1635 = vmatpush1.msra.mxu0 %v1604
    %1636 = vmatprep.subr.mxu0 0.0
    %1637 = vmatpush1.msra.mxu0 %v1603
    %1638 = vmatprep.subr.mxu0 0.0
    %1639 = vmatpush1.msra.mxu0 %v1602
    %1640 = vmatprep.subr.mxu0 0.0
    %1641 = vmatpush1.msra.mxu0 %v1601
    %1642 = vmatprep.subr.mxu0 0.0
    %1643 = vmatpush1.msra.mxu0 %v1600
    %1644 = vmatprep.subr.mxu0 0.0
    %1645 = vmatpush1.msra.mxu0 %v1599
    %1646 = vmatprep.subr.mxu0 0.0
    %1647 = vmatpush1.msra.mxu0 %v1598
    %1648 = vmatprep.subr.mxu0 0.0
    %1649 = vmatpush1.msra.mxu0 %v1597
    %1650 = vmatprep.subr.mxu0 0.0
    %1651 = vmatpush1.msra.mxu0 %v1596
    %1652 = vmatprep.subr.mxu0 0.0
    %1653 = vmatpush1.msra.mxu0 %v1595
    %1654 = vmatprep.subr.mxu0 0.0
    %1655 = vmatpush1.msra.mxu0 %v1594
    %1656 = vmatprep.subr.mxu0 0.0
    %1657 = vmatpush1.msra.mxu0 %v1593
    %1658 = vmatprep.subr.mxu0 0.0
    %1659 = vmatpush1.msra.mxu0 %v1592
    %1660 = vmatprep.subr.mxu0 0.0
    %1661 = vmatpush1.msra.mxu0 %v1591
    %1662 = vmatprep.subr.mxu0 0.0
    %1663 = vmatpush2.msra.mxu0 0.0
    %1664 = vmatprep.subr.mxu0 0.0
    %1665 = vmatpush2.msra.mxu0 0.0
    %1666 = vmatprep.subr.mxu0 0.0
    %1667 = vmatpush2.msra.mxu0 0.0
    %1668 = vmatprep.subr.mxu0 0.0
    %1669 = vmatpush2.msra.mxu0 0.0
    %1670 = vmatprep.subr.mxu0 0.0
    %1671 = vmatpush2.msra.mxu0 0.0
    %1672 = vmatprep.subr.mxu0 0.0
    %1673 = vmatpush2.msra.mxu0 0.0
    %1674 = vmatprep.subr.mxu0 0.0
    %1675 = vmatpush2.msra.mxu0 0.0
    %1676 = vmatprep.subr.mxu0 0.0
    %1677 = vmatpush2.msra.mxu0 0.0
    %1678 = vmatprep.subr.mxu0 0.0
    %1679 = vmatpush2.msra.mxu0 0.0
    %1680 = vmatprep.subr.mxu0 0.0
    %1681 = vmatpush2.msra.mxu0 0.0
    %1682 = vmatprep.subr.mxu0 0.0
    %1683 = vmatpush2.msra.mxu0 0.0
    %1684 = vmatprep.subr.mxu0 0.0
    %1685 = vmatpush2.msra.mxu0 0.0
    %1686 = vmatprep.subr.mxu0 0.0
    %1687 = vmatpush2.msra.mxu0 0.0
    %1688 = vmatprep.subr.mxu0 0.0
    %1689 = vmatpush2.msra.mxu0 0.0
    %1690 = vmatprep.subr.mxu0 0.0
    %1691 = vmatpush2.msra.mxu0 0.0
    %1692 = vmatprep.subr.mxu0 0.0
    %1693 = vmatpush2.msra.mxu0 0.0
    %1694 = vmatprep.mubr.f32.mxu0 0.0
    %1695 = vmatmul.mubr.f32.gmra.mxu0 %v1628
    %v1696 = vpop.f32.mrf.mxu0
    %v1697 = vadd.f32 0.0, %v1696
    %v1698 = vpop.f32.mrf.mxu0
    %1699 = vdwg.mxu0
    %1700 = vadd.xlane.f32.xlu0 %v92
    %v1701 = vpop.xlane.xlu0 %1700
    %v1702 = vmax.f32 %v1701, 1.0
    %v1703 = vrcp.pop %v1702
    %v1704 = vmul.f32 %v1697, %v1703
    %v1705 = vld [vmem:[#allocation8] sm:$0xff]
    %v1706 = vld [vmem:[#allocation8 + $0x8] sm:$0xff]
    %v1707 = vld [vmem:[#allocation8 + $0x10] sm:$0xff]
    %v1708 = vld [vmem:[#allocation8 + $0x18] sm:$0xff]
    %v1709 = vld [vmem:[#allocation8 + $0x20] sm:$0xff]
    %v1710 = vld [vmem:[#allocation8 + $0x28] sm:$0xff]
    %v1711 = vld [vmem:[#allocation8 + $0x30] sm:$0xff]
    %v1712 = vld [vmem:[#allocation8 + $0x38] sm:$0xff]
    %v1713 = vld [vmem:[#allocation8 + $0x40] sm:$0xff]
    %v1714 = vld [vmem:[#allocation8 + $0x48] sm:$0xff]
    %v1715 = vld [vmem:[#allocation8 + $0x50] sm:$0xff]
    %v1716 = vld [vmem:[#allocation8 + $0x58] sm:$0xff]
    %v1717 = vld [vmem:[#allocation8 + $0x60] sm:$0xff]
    %v1718 = vld [vmem:[#allocation8 + $0x68] sm:$0xff]
    %v1719 = vld [vmem:[#allocation8 + $0x70] sm:$0xff]
    %v1720 = vld [vmem:[#allocation8 + $0x78] sm:$0xff]
    %v1721 = vld [vmem:[%s4] sm:$0x1]
    %v1723 = vlaneseq
    %v1724 = vshrl.u32 %v1723, 7
    %v1725 = vsub.s32 0, %v1724
    %v1726 = vrot.slane %v1721, %v1725
    %1728 = vmatprep.subr.mxu0 0.0
    %1729 = vmatpush1.msra.mxu0 %v1720
    %1730 = vmatprep.subr.mxu0 0.0
    %1731 = vmatpush1.msra.mxu0 %v1719
    %1732 = vmatprep.subr.mxu0 0.0
    %1733 = vmatpush1.msra.mxu0 %v1718
    %1734 = vmatprep.subr.mxu0 0.0
    %1735 = vmatpush1.msra.mxu0 %v1717
    %1736 = vmatprep.subr.mxu0 0.0
    %1737 = vmatpush1.msra.mxu0 %v1716
    %1738 = vmatprep.subr.mxu0 0.0
    %1739 = vmatpush1.msra.mxu0 %v1715
    %1740 = vmatprep.subr.mxu0 0.0
    %1741 = vmatpush1.msra.mxu0 %v1714
    %1742 = vmatprep.subr.mxu0 0.0
    %1743 = vmatpush1.msra.mxu0 %v1713
    %1744 = vmatprep.subr.mxu0 0.0
    %1745 = vmatpush1.msra.mxu0 %v1712
    %1746 = vmatprep.subr.mxu0 0.0
    %1747 = vmatpush1.msra.mxu0 %v1711
    %1748 = vmatprep.subr.mxu0 0.0
    %1749 = vmatpush1.msra.mxu0 %v1710
    %1750 = vmatprep.subr.mxu0 0.0
    %1751 = vmatpush1.msra.mxu0 %v1709
    %1752 = vmatprep.subr.mxu0 0.0
    %1753 = vmatpush1.msra.mxu0 %v1708
    %1754 = vmatprep.subr.mxu0 0.0
    %1755 = vmatpush1.msra.mxu0 %v1707
    %1756 = vmatprep.subr.mxu0 0.0
    %1757 = vmatpush1.msra.mxu0 %v1706
    %1758 = vmatprep.subr.mxu0 0.0
    %1759 = vmatpush1.msra.mxu0 %v1705
    %1760 = vmatprep.subr.mxu0 0.0
    %1761 = vmatpush2.msra.mxu0 0.0
    %1762 = vmatprep.subr.mxu0 0.0
    %1763 = vmatpush2.msra.mxu0 0.0
    %1764 = vmatprep.subr.mxu0 0.0
    %1765 = vmatpush2.msra.mxu0 0.0
    %1766 = vmatprep.subr.mxu0 0.0
    %1767 = vmatpush2.msra.mxu0 0.0
    %1768 = vmatprep.subr.mxu0 0.0
    %1769 = vmatpush2.msra.mxu0 0.0
    %1770 = vmatprep.subr.mxu0 0.0
    %1771 = vmatpush2.msra.mxu0 0.0
    %1772 = vmatprep.subr.mxu0 0.0
    %1773 = vmatpush2.msra.mxu0 0.0
    %1774 = vmatprep.subr.mxu0 0.0
    %1775 = vmatpush2.msra.mxu0 0.0
    %1776 = vmatprep.subr.mxu0 0.0
    %1777 = vmatpush2.msra.mxu0 0.0
    %1778 = vmatprep.subr.mxu0 0.0
    %1779 = vmatpush2.msra.mxu0 0.0
    %1780 = vmatprep.subr.mxu0 0.0
    %1781 = vmatpush2.msra.mxu0 0.0
    %1782 = vmatprep.subr.mxu0 0.0
    %1783 = vmatpush2.msra.mxu0 0.0
    %1784 = vmatprep.subr.mxu0 0.0
    %1785 = vmatpush2.msra.mxu0 0.0
    %1786 = vmatprep.subr.mxu0 0.0
    %1787 = vmatpush2.msra.mxu0 0.0
    %1788 = vmatprep.subr.mxu0 0.0
    %1789 = vmatpush2.msra.mxu0 0.0
    %1790 = vmatprep.subr.mxu0 0.0
    %1791 = vmatpush2.msra.mxu0 0.0
    %1792 = vmatprep.mubr.f32.mxu0 0.0
    %1793 = vmatmul.mubr.f32.gmra.mxu0 %v1704
    %v1794 = vpop.f32.mrf.mxu0
    %v1795 = vadd.f32 %v1726, %v1794
    %v1796 = vpop.f32.mrf.mxu0
    %1797 = vdwg.mxu0
    %v1798 = vtanh.pop %v1795
    %v1799 = vld [vmem:[#allocation10] sm:$0xff]
    %v1800 = vld [vmem:[#allocation10 + $0x8] sm:$0xff]
    %v1801 = vld [vmem:[#allocation10 + $0x10] sm:$0xff]
    %v1802 = vld [vmem:[#allocation10 + $0x18] sm:$0xff]
    %v1803 = vld [vmem:[#allocation10 + $0x20] sm:$0xff]
    %v1804 = vld [vmem:[#allocation10 + $0x28] sm:$0xff]
    %v1805 = vld [vmem:[#allocation10 + $0x30] sm:$0xff]
    %v1806 = vld [vmem:[#allocation10 + $0x38] sm:$0xff]
    %v1807 = vld [vmem:[#allocation10 + $0x40] sm:$0xff]
    %v1808 = vld [vmem:[#allocation10 + $0x48] sm:$0xff]
    %v1809 = vld [vmem:[#allocation10 + $0x50] sm:$0xff]
    %v1810 = vld [vmem:[#allocation10 + $0x58] sm:$0xff]
    %v1811 = vld [vmem:[#allocation10 + $0x60] sm:$0xff]
    %v1812 = vld [vmem:[#allocation10 + $0x68] sm:$0xff]
    %v1813 = vld [vmem:[#allocation10 + $0x70] sm:$0xff]
    %v1814 = vld [vmem:[#allocation10 + $0x78] sm:$0xff]
    %v1815 = vld [vmem:[%s6] sm:$0x1]
    %v1817 = vlaneseq
    %v1818 = vshrl.u32 %v1817, 7
    %v1819 = vsub.s32 0, %v1818
    %v1820 = vrot.slane %v1815, %v1819
    %1822 = vmatprep.subr.mxu0 0.0
    %1823 = vmatpush1.msra.mxu0 %v1814
    %1824 = vmatprep.subr.mxu0 0.0
    %1825 = vmatpush1.msra.mxu0 %v1813
    %1826 = vmatprep.subr.mxu0 0.0
    %1827 = vmatpush1.msra.mxu0 %v1812
    %1828 = vmatprep.subr.mxu0 0.0
    %1829 = vmatpush1.msra.mxu0 %v1811
    %1830 = vmatprep.subr.mxu0 0.0
    %1831 = vmatpush1.msra.mxu0 %v1810
    %1832 = vmatprep.subr.mxu0 0.0
    %1833 = vmatpush1.msra.mxu0 %v1809
    %1834 = vmatprep.subr.mxu0 0.0
    %1835 = vmatpush1.msra.mxu0 %v1808
    %1836 = vmatprep.subr.mxu0 0.0
    %1837 = vmatpush1.msra.mxu0 %v1807
    %1838 = vmatprep.subr.mxu0 0.0
    %1839 = vmatpush1.msra.mxu0 %v1806
    %1840 = vmatprep.subr.mxu0 0.0
    %1841 = vmatpush1.msra.mxu0 %v1805
    %1842 = vmatprep.subr.mxu0 0.0
    %1843 = vmatpush1.msra.mxu0 %v1804
    %1844 = vmatprep.subr.mxu0 0.0
    %1845 = vmatpush1.msra.mxu0 %v1803
    %1846 = vmatprep.subr.mxu0 0.0
    %1847 = vmatpush1.msra.mxu0 %v1802
    %1848 = vmatprep.subr.mxu0 0.0
    %1849 = vmatpush1.msra.mxu0 %v1801
    %1850 = vmatprep.subr.mxu0 0.0
    %1851 = vmatpush1.msra.mxu0 %v1800
    %1852 = vmatprep.subr.mxu0 0.0
    %1853 = vmatpush1.msra.mxu0 %v1799
    %1854 = vmatprep.subr.mxu0 0.0
    %1855 = vmatpush2.msra.mxu0 0.0
    %1856 = vmatprep.subr.mxu0 0.0
    %1857 = vmatpush2.msra.mxu0 0.0
    %1858 = vmatprep.subr.mxu0 0.0
    %1859 = vmatpush2.msra.mxu0 0.0
    %1860 = vmatprep.subr.mxu0 0.0
    %1861 = vmatpush2.msra.mxu0 0.0
    %1862 = vmatprep.subr.mxu0 0.0
    %1863 = vmatpush2.msra.mxu0 0.0
    %1864 = vmatprep.subr.mxu0 0.0
    %1865 = vmatpush2.msra.mxu0 0.0
    %1866 = vmatprep.subr.mxu0 0.0
    %1867 = vmatpush2.msra.mxu0 0.0
    %1868 = vmatprep.subr.mxu0 0.0
    %1869 = vmatpush2.msra.mxu0 0.0
    %1870 = vmatprep.subr.mxu0 0.0
    %1871 = vmatpush2.msra.mxu0 0.0
    %1872 = vmatprep.subr.mxu0 0.0
    %1873 = vmatpush2.msra.mxu0 0.0
    %1874 = vmatprep.subr.mxu0 0.0
    %1875 = vmatpush2.msra.mxu0 0.0
    %1876 = vmatprep.subr.mxu0 0.0
    %1877 = vmatpush2.msra.mxu0 0.0
    %1878 = vmatprep.subr.mxu0 0.0
    %1879 = vmatpush2.msra.mxu0 0.0
    %1880 = vmatprep.subr.mxu0 0.0
    %1881 = vmatpush2.msra.mxu0 0.0
    %1882 = vmatprep.subr.mxu0 0.0
    %1883 = vmatpush2.msra.mxu0 0.0
    %1884 = vmatprep.subr.mxu0 0.0
    %1885 = vmatpush2.msra.mxu0 0.0
    %1886 = vmatprep.mubr.f32.mxu0 0.0
    %1887 = vmatmul.mubr.f32.gmra.mxu0 %v1798
    %v1888 = vpop.f32.mrf.mxu0
    %v1889 = vadd.f32 %v1820, %v1888
    %v1890 = vpop.f32.mrf.mxu0
    %1891 = vdwg.mxu0
    %1892 = vst [vmem:[#allocation11] sm:$0xff] %v1889
    // Predicated region
    $region50: #{tpu_custom_call.1} parent=1 // pred_check
      _
    $region51: #{tpu_custom_call.1} parent=1 // pred_check_branch
      %1894 = sbr.rel (0) target = $region53
    $region52: #{tpu_custom_call.1} parent=1 // pred_region
      %s1896 = ssub.s32 128, 128
      %1897 = vsyncadd [#allocation4], %s1896
      %s1899 = sshll.u32 [#allocation11], 4
      %s1900 = int_to_ptr.vmem [resolvable:$true] %s1899
      %1902 = dma.vmem_to_hbm [thread:$0]  %s1900, 128, %s7, [#allocation4]
    $region53: #{tpu_custom_call.1} parent=1 // pred_fallthru
      _
    // Predicated region
    $region54: #{tpu_custom_call.1} parent=1 // pred_check
      _
    $region55: #{tpu_custom_call.1} parent=1 // pred_check_branch
      %1904 = sbr.rel (0) target = $region57
    $region56: #{tpu_custom_call.1} parent=1 // pred_region
      %1905 = dma.done [#allocation4], 128
    $region57: #{tpu_custom_call.1} parent=1 // pred_fallthru
      _
    %1906 = vsyncpa [#allocation3], 1
    %1907 = vsyncpa [#allocation6], 1
    %1908 = vsyncpa [#allocation9], 1
    %1909 = vsyncpa [#allocation4], 1

</llo_original>
